<compile_context>
chip_gen: v7x
topology: tpu7x:2x2x1
jax: 0.10.0
libtpu: 0.0.40
codegen_flags: <defaults>
</compile_context>

<pallas_src>
import itertools

import numpy as np
import jax
import jax.numpy as jnp
from jax import lax
from jax.experimental import pallas as pl
from jax.experimental.pallas import tpu as pltpu


# ---------------------------------------------------------------------------
# Pallas kernel: fused  O = relu(W @ X + b)  with a K-reduction grid axis.
#   W: (Nout, tk) bf16 (BN scale pre-folded), X: (tk, tm) bf16, b: (Nout, 1) f32.
#   acc: (Nout, tm) f32 VMEM scratch, init at k==0, finalized at k==last.
# ---------------------------------------------------------------------------
def _matmul_bias_relu_kernel(w_ref, x_ref, b_ref, o_ref, acc_ref):
    k = pl.program_id(1)

    @pl.when(k == 0)
    def _init():
        acc_ref[...] = jnp.zeros_like(acc_ref)

    acc_ref[...] += jnp.dot(w_ref[...], x_ref[...],
                            preferred_element_type=jnp.float32)

    @pl.when(k == pl.num_programs(1) - 1)
    def _finalize():
        o_ref[...] = jnp.maximum(acc_ref[...] + b_ref[...], 0.0).astype(o_ref.dtype)


def _choose_tm(M, tm_max):
    """Lane-dense M tile (multiple of 128), keeping >=2 tiles for megacore."""
    if M <= 128:
        return M
    tm = min(tm_max, M)
    tm = min(tm, max(128, (M // 2) // 128 * 128))   # >= 2 tiles on the parallel axis
    return max(128, (tm // 128) * 128)


def fused_matmul_bias_relu(w, x, b, *, tm_max=1024, tk_max=2048,
                           out_dtype=jnp.float32):
    """relu(w @ x + b): w (Nout, K) bf16, x (K, M) bf16, b (Nout, 1) f32."""
    Nout, K = w.shape
    K2, M = x.shape
    assert K == K2

    tm = _choose_tm(M, tm_max)
    Mp = pl.cdiv(M, tm) * tm
    if Mp != M:                                    # ragged fallback (unused here)
        x = jnp.pad(x, ((0, 0), (0, Mp - M)))

    if K <= tk_max:
        tk, Kp = K, K                              # single reduction step
    else:
        tk = tk_max
        Kp = pl.cdiv(K, tk) * tk
        w = jnp.pad(w, ((0, 0), (0, Kp - K)))
        x = jnp.pad(x, ((0, Kp - K), (0, 0)))

    out_bytes = np.dtype(out_dtype).itemsize
    cost = pl.CostEstimate(
        flops=2 * Nout * Kp * Mp,
        transcendentals=0,
        bytes_accessed=Nout * Kp * 2 + Kp * Mp * 2 + Nout * 4 + Nout * Mp * out_bytes,
    )

    out = pl.pallas_call(
        _matmul_bias_relu_kernel,
        out_shape=jax.ShapeDtypeStruct((Nout, Mp), out_dtype),
        grid=(Mp // tm, Kp // tk),
        in_specs=[
            pl.BlockSpec((Nout, tk), lambda i, k: (0, k)),   # weights (resident rows)
            pl.BlockSpec((tk, tm), lambda i, k: (k, i)),     # streamed patches
            pl.BlockSpec((Nout, 1), lambda i, k: (0, 0)),    # bias
        ],
        out_specs=pl.BlockSpec((Nout, tm), lambda i, k: (0, i)),
        scratch_shapes=[pltpu.VMEM((Nout, tm), jnp.float32)],
        compiler_params=pltpu.CompilerParams(
            dimension_semantics=("parallel", "arbitrary"),
            vmem_limit_bytes=48 * 1024 * 1024,     # explicit; leaves headroom on v7x
        ),
        cost_estimate=cost,
    )(w, x, b)
    return out if Mp == M else out[:, :M]


# ---------------------------------------------------------------------------
# Host-side glue (cheap vs. the matmuls): BN folding, channel-first im2col,
# fused polyphase weight construction for the ConvTranspose3d.
# ---------------------------------------------------------------------------
def _bn_fold(gamma, beta, rmean, rvar, eps=1e-5):
    scale = gamma / jnp.sqrt(rvar + eps)
    return scale, beta - rmean * scale


def _patches_t(xp_cf, taps, out_dhw):
    # xp_cf: (C, N, Dp, Hp, Wp) padded activation, channel-first.
    # Returns X: (len(taps)*C, N*Do*Ho*Wo); row k = tap*C + c,
    # column m = ((n*Do + d)*Ho + h)*Wo + w.
    C = xp_cf.shape[0]
    Do, Ho, Wo = out_dhw
    slabs = [xp_cf[:, :, a:a + Do, b:b + Ho, c:c + Wo].reshape(C, -1)
             for (a, b, c) in taps]
    return jnp.concatenate(slabs, axis=0)


def conv_t_conv_forward(x, params, *, tm_max=1024):
    """x: (N, Cin, D, H, W) f32 -> (N, Cout, 2D, 2H, 2W) f32 (NCDHW)."""
    N, Cin, D, H, W = x.shape
    w1, b1 = params["conv_w"], params["conv_b"]            # (Cout,Cin,3,3,3),(Cout,)
    Cout = w1.shape[0]

    # intermediate channel count padded to a multiple of 16 so the bf16
    # intermediate activation packs full sublanes (review: Cout=8 -> half-empty vregs)
    Ch = ((Cout + 15) // 16) * 16

    taps27 = list(itertools.product(range(3), repeat=3))    # (a, b, c) in {0,1,2}^3

    # ---------------- Conv3d(k=3, p=1) + BN + ReLU -------------------------
    s1, o1 = _bn_fold(params["bn1_g"], params["bn1_b"],
                      params["bn1_rm"], params["bn1_rv"])
    w1m = w1.transpose(0, 2, 3, 4, 1).reshape(Cout, 27 * Cin) * s1[:, None]
    w1m = jnp.concatenate(
        [w1m, jnp.zeros((Ch - Cout, 27 * Cin), w1m.dtype)], axis=0
    ).astype(jnp.bfloat16)                                   # (Ch, 27*Cin)
    bias1 = jnp.concatenate(
        [s1 * b1 + o1, jnp.zeros((Ch - Cout,), jnp.float32)]).reshape(Ch, 1)

    xpad = jnp.pad(x.astype(jnp.bfloat16),
                   ((0, 0), (0, 0), (1, 1), (1, 1), (1, 1)))
    xp_cf = xpad.transpose(1, 0, 2, 3, 4)                    # (Cin, N, D+2, H+2, W+2)
    x1 = _patches_t(xp_cf, taps27, (D, H, W))                # (27*Cin, M) bf16

    h = fused_matmul_bias_relu(w1m, x1, bias1, tm_max=tm_max,
                               out_dtype=jnp.bfloat16)       # (Ch, M)
    h_cf = h.reshape(Ch, N, D, H, W)

    # ---- ConvTranspose3d(k=4, s=2, p=1) + BN + ReLU, fused 8-phase matmul ---
    wt, bt = params["tconv_w"], params["tconv_b"]            # (Cout,Cout,4,4,4),(Cout,)
    s2, o2 = _bn_fold(params["bn2_g"], params["bn2_b"],
                      params["bn2_rm"], params["bn2_rv"])
    # equivalent forward-conv kernel: flip spatially, swap in/out channels
    w_eq = jnp.flip(wt, axis=(2, 3, 4)).transpose(1, 0, 2, 3, 4)   # (Cout,Cout,4,4,4)

    # Fused phase weights: W2f[p*Cout+co, t27*Ch+ci] = s2[co]*w_eq[co,ci,pd+2a,ph+2b,pw+2c]
    # where the 27-tap index t27 = (pd+a)*9 + (ph+b)*3 + (pw+c); taps outside a
    # phase's 8 offsets (and padded channels ci>=Cout) stay zero.
    phases = list(itertools.product(range(2), repeat=3))      # (pd, ph, pw)
    w2f = jnp.zeros((8, Cout, 27, Ch), jnp.float32)
    for pidx, (pd, ph, pw) in enumerate(phases):
        sub = w_eq[:, :, pd::2, ph::2, pw::2]                 # (Cout, Cout, 2, 2, 2)
        for a, b, c in itertools.product(range(2), repeat=3):
            t27 = (pd + a) * 9 + (ph + b) * 3 + (pw + c)
            w2f = w2f.at[pidx, :, t27, :Cout].set(sub[:, :, a, b, c])
    w2f = (w2f * s2[None, :, None, None]).reshape(8 * Cout, 27 * Ch)
    w2f = w2f.astype(jnp.bfloat16)                            # (8*Cout, 27*Ch)
    bias2 = jnp.tile(s2 * bt + o2, 8).reshape(8 * Cout, 1)

    # Single shared 27-tap patch matrix for all 8 phases.
    hpad = jnp.pad(h_cf, ((0, 0), (0, 0), (1, 1), (1, 1), (1, 1)))
    x2 = _patches_t(hpad, taps27, (D, H, W))                  # (27*Ch, M) bf16

    y = fused_matmul_bias_relu(w2f, x2, bias2, tm_max=tm_max,
                               out_dtype=jnp.float32)         # (8*Cout, M)

    # interleave the 8 phase outputs onto the stride-2 output grid
    # TODO(synk): this is still a full-output XLA transpose (see header TODO).
    y = y.reshape(2, 2, 2, Cout, N, D, H, W)                  # (pd,ph,pw,co,n,q,r,s)
    y = y.transpose(4, 3, 5, 0, 6, 1, 7, 2)                   # (n,co,q,pd,r,ph,s,pw)
    return y.reshape(N, Cout, 2 * D, 2 * H, 2 * W)


# ---------------------------------------------------------------------------
# Pure-JAX reference (lax convs, f32 HIGHEST) for correctness checking
# ---------------------------------------------------------------------------
def reference_forward(x, params):
    dn = ("NCDHW", "OIDHW", "NCDHW")
    prec = lax.Precision.HIGHEST
    w1, b1 = params["conv_w"], params["conv_b"]
    h = lax.conv_general_dilated(x, w1, (1, 1, 1), ((1, 1),) * 3,
                                 dimension_numbers=dn, precision=prec)
    h = h + b1[None, :, None, None, None]
    s1, o1 = _bn_fold(params["bn1_g"], params["bn1_b"],
                      params["bn1_rm"], params["bn1_rv"])
    h = jnp.maximum(h * s1[None, :, None, None, None]
                    + o1[None, :, None, None, None], 0.0)

    wt, bt = params["tconv_w"], params["tconv_b"]
    w_eq = jnp.flip(wt, axis=(2, 3, 4)).transpose(1, 0, 2, 3, 4)
    y = lax.conv_general_dilated(h, w_eq, (1, 1, 1), ((2, 2),) * 3,
                                 lhs_dilation=(2, 2, 2),
                                 dimension_numbers=dn, precision=prec)
    y = y + bt[None, :, None, None, None]
    s2, o2 = _bn_fold(params["bn2_g"], params["bn2_b"],
                      params["bn2_rm"], params["bn2_rv"])
    return jnp.maximum(y * s2[None, :, None, None, None]
                       + o2[None, :, None, None, None], 0.0)


# ---------------------------------------------------------------------------
def make_params(key, in_channels, out_channels):
    ks = jax.random.split(key, 8)
    return {
        "conv_w": 0.1 * jax.random.normal(ks[0], (out_channels, in_channels, 3, 3, 3), jnp.float32),
        "conv_b": 0.1 * jax.random.normal(ks[1], (out_channels,), jnp.float32),
        "bn1_g": 1.0 + 0.1 * jax.random.normal(ks[2], (out_channels,), jnp.float32),
        "bn1_b": 0.1 * jax.random.normal(ks[3], (out_channels,), jnp.float32),
        "bn1_rm": jnp.zeros((out_channels,), jnp.float32),
        "bn1_rv": jnp.ones((out_channels,), jnp.float32),
        "tconv_w": 0.1 * jax.random.normal(ks[4], (out_channels, out_channels, 4, 4, 4), jnp.float32),
        "tconv_b": 0.1 * jax.random.normal(ks[5], (out_channels,), jnp.float32),
        "bn2_g": 1.0 + 0.1 * jax.random.normal(ks[6], (out_channels,), jnp.float32),
        "bn2_b": 0.1 * jax.random.normal(ks[7], (out_channels,), jnp.float32),
        "bn2_rm": jnp.zeros((out_channels,), jnp.float32),
        "bn2_rv": jnp.ones((out_channels,), jnp.float32),
    }


if __name__ == "__main__":
    key = jax.random.PRNGKey(0)
    kx, kp = jax.random.split(key)
    in_channels, out_channels = 4, 8
    N, D, H, W = 2, 8, 8, 8
    x = jax.random.normal(kx, (N, in_channels, D, H, W), jnp.float32)
    params = make_params(kp, in_channels, out_channels)

    fwd = jax.jit(conv_t_conv_forward)
    y = jax.block_until_ready(fwd(x, params))
    assert y.shape == (N, out_channels, 2 * D, 2 * H, 2 * W), y.shape

    y_ref = jax.block_until_ready(reference_forward(x, params))
    # bf16 MXU inputs with f32 accumulation vs. an f32 HIGHEST reference ->
    # tolerance relaxed accordingly (observed error is well below this bound).
    max_err = float(jnp.max(jnp.abs(y - y_ref)))
    assert jnp.allclose(y, y_ref, atol=2e-2, rtol=2e-2), max_err

    print("KERNEL_OK")
</pallas_src>

<mosaic_0001>
module attributes {stable_mosaic.version = 11 : i64} {
  func.func @_matmul_bias_relu_kernel(%arg0: i32, %arg1: i32, %arg2: memref<16x108xbf16, #tpu.memory_space<vmem>>, %arg3: memref<108x512xbf16, #tpu.memory_space<vmem>>, %arg4: memref<16x1xf32, #tpu.memory_space<vmem>>, %arg5: memref<16x512xbf16, #tpu.memory_space<vmem>>, %arg6: memref<16x512xf32, #tpu.memory_space<vmem>>) attributes {dimension_semantics = [#tpu.dimension_semantics<parallel>, #tpu.dimension_semantics<arbitrary>], iteration_bounds = array<i64: 2, 1>, scalar_prefetch = 0 : i64, scratch_operands = 1 : i64, tpu.core_type = #tpu.core_type<tc>, window_params = [{transform_indices = @transform_0, window_bounds = array<i64: 16, 108>}, {transform_indices = @transform_1, window_bounds = array<i64: 108, 512>}, {pipeline_mode = #tpu.pipeline_mode<synchronous>, transform_indices = @transform_2, window_bounds = array<i64: 16, 1>}, {transform_indices = @transform_3, window_bounds = array<i64: 16, 512>}]} {
    %c0_i32 = arith.constant 0 : i32
    %0 = arith.cmpi eq, %arg1, %c0_i32 : i32
    %1 = arith.extui %0 : i1 to i32
    %c0_i32_0 = arith.constant 0 : i32
    %2 = arith.cmpi ne, %1, %c0_i32_0 : i32
    scf.if %2 {
      %cst_10 = arith.constant 0.000000e+00 : f32
      %12 = vector.broadcast %cst_10 : f32 to vector<16x512xf32>
      %c0_11 = arith.constant 0 : index
      %c0_12 = arith.constant 0 : index
      %13 = vector.load %arg6[%c0_11, %c0_12] : memref<16x512xf32, #tpu.memory_space<vmem>>, vector<16x512xf32>
      tpu.vector_store %arg6[%c0_11, %c0_12], %12 {strides = array<i32>} : memref<16x512xf32, #tpu.memory_space<vmem>>, vector<16x512xf32>,
    } else {
    }
    %c0 = arith.constant 0 : index
    %c0_1 = arith.constant 0 : index
    %3 = vector.load %arg6[%c0, %c0_1] : memref<16x512xf32, #tpu.memory_space<vmem>>, vector<16x512xf32>
    %c0_2 = arith.constant 0 : index
    %c0_3 = arith.constant 0 : index
    %4 = vector.load %arg2[%c0_2, %c0_3] : memref<16x108xbf16, #tpu.memory_space<vmem>>, vector<16x108xbf16>
    %c0_4 = arith.constant 0 : index
    %c0_5 = arith.constant 0 : index
    %5 = vector.load %arg3[%c0_4, %c0_5] : memref<108x512xbf16, #tpu.memory_space<vmem>>, vector<108x512xbf16>
    %cst = arith.constant dense<0.000000e+00> : vector<16x512xf32>
    %6 = tpu.matmul %4, %5, %cst {dimension_numbers = #tpu.dot_dimension_numbers<[1], [0], [0], [1], [0, 0, 1, 1], [], []>} : vector<16x108xbf16>, vector<108x512xbf16>, vector<16x512xf32> -> vector<16x512xf32>
    %7 = arith.addf %3, %6 : vector<16x512xf32>
    %c0_6 = arith.constant 0 : index
    %c0_7 = arith.constant 0 : index
    %8 = vector.load %arg6[%c0_6, %c0_7] : memref<16x512xf32, #tpu.memory_space<vmem>>, vector<16x512xf32>
    tpu.vector_store %arg6[%c0_6, %c0_7], %7 {strides = array<i32>} : memref<16x512xf32, #tpu.memory_space<vmem>>, vector<16x512xf32>,
    %c0_i32_8 = arith.constant 0 : i32
    %9 = arith.cmpi eq, %arg1, %c0_i32_8 : i32
    %10 = arith.extui %9 : i1 to i32
    %c0_i32_9 = arith.constant 0 : i32
    %11 = arith.cmpi ne, %10, %c0_i32_9 : i32
    scf.if %11 {
      %c0_10 = arith.constant 0 : index
      %c0_11 = arith.constant 0 : index
      %12 = vector.load %arg6[%c0_10, %c0_11] : memref<16x512xf32, #tpu.memory_space<vmem>>, vector<16x512xf32>
      %c0_12 = arith.constant 0 : index
      %c0_13 = arith.constant 0 : index
      %13 = vector.load %arg4[%c0_12, %c0_13] : memref<16x1xf32, #tpu.memory_space<vmem>>, vector<16x1xf32>
      %14 = vector.broadcast %13 : vector<16x1xf32> to vector<16x512xf32>
      %15 = arith.addf %12, %14 : vector<16x512xf32>
      %cst_14 = arith.constant 0.000000e+00 : f32
      %16 = vector.broadcast %cst_14 : f32 to vector<16x512xf32>
      %17 = arith.maximumf %15, %16 : vector<16x512xf32>
      %18 = arith.truncf %17 : vector<16x512xf32> to vector<16x512xbf16>
      %c0_15 = arith.constant 0 : index
      %c0_16 = arith.constant 0 : index
      %19 = vector.load %arg5[%c0_15, %c0_16] : memref<16x512xbf16, #tpu.memory_space<vmem>>, vector<16x512xbf16>
      tpu.vector_store %arg5[%c0_15, %c0_16], %18 {strides = array<i32>} : memref<16x512xbf16, #tpu.memory_space<vmem>>, vector<16x512xbf16>,
    } else {
    }
    return
  }
  func.func @transform_0(%arg0: i32, %arg1: i32) -> (i32, i32) {
    %c0_i32 = arith.constant 0 : i32
    %c0_i32_0 = arith.constant 0 : i32
    return %c0_i32, %arg1 : i32, i32
  }
  func.func @transform_1(%arg0: i32, %arg1: i32) -> (i32, i32) {
    %c0_i32 = arith.constant 0 : i32
    return %arg1, %arg0 : i32, i32
  }
  func.func @transform_2(%arg0: i32, %arg1: i32) -> (i32, i32) {
    %c0_i32 = arith.constant 0 : i32
    %c0_i32_0 = arith.constant 0 : i32
    %c0_i32_1 = arith.constant 0 : i32
    return %c0_i32, %c0_i32_0 : i32, i32
  }
  func.func @transform_3(%arg0: i32, %arg1: i32) -> (i32, i32) {
    %c0_i32 = arith.constant 0 : i32
    %c0_i32_0 = arith.constant 0 : i32
    return %c0_i32, %arg0 : i32, i32
  }
}

module attributes {stable_mosaic.version = 11 : i64} {
  func.func @_matmul_bias_relu_kernel(%arg0: i32, %arg1: i32, %arg2: memref<64x432xbf16, #tpu.memory_space<vmem>>, %arg3: memref<432x512xbf16, #tpu.memory_space<vmem>>, %arg4: memref<64x1xf32, #tpu.memory_space<vmem>>, %arg5: memref<64x512xf32, #tpu.memory_space<vmem>>, %arg6: memref<64x512xf32, #tpu.memory_space<vmem>>) attributes {dimension_semantics = [#tpu.dimension_semantics<parallel>, #tpu.dimension_semantics<arbitrary>], iteration_bounds = array<i64: 2, 1>, scalar_prefetch = 0 : i64, scratch_operands = 1 : i64, tpu.core_type = #tpu.core_type<tc>, window_params = [{transform_indices = @transform_0, window_bounds = array<i64: 64, 432>}, {transform_indices = @transform_1, window_bounds = array<i64: 432, 512>}, {pipeline_mode = #tpu.pipeline_mode<synchronous>, transform_indices = @transform_2, window_bounds = array<i64: 64, 1>}, {transform_indices = @transform_3, window_bounds = array<i64: 64, 512>}]} {
    %c0_i32 = arith.constant 0 : i32
    %0 = arith.cmpi eq, %arg1, %c0_i32 : i32
    %1 = arith.extui %0 : i1 to i32
    %c0_i32_0 = arith.constant 0 : i32
    %2 = arith.cmpi ne, %1, %c0_i32_0 : i32
    scf.if %2 {
      %cst_10 = arith.constant 0.000000e+00 : f32
      %12 = vector.broadcast %cst_10 : f32 to vector<64x512xf32>
      %c0_11 = arith.constant 0 : index
      %c0_12 = arith.constant 0 : index
      %13 = vector.load %arg6[%c0_11, %c0_12] : memref<64x512xf32, #tpu.memory_space<vmem>>, vector<64x512xf32>
      tpu.vector_store %arg6[%c0_11, %c0_12], %12 {strides = array<i32>} : memref<64x512xf32, #tpu.memory_space<vmem>>, vector<64x512xf32>,
    } else {
    }
    %c0 = arith.constant 0 : index
    %c0_1 = arith.constant 0 : index
    %3 = vector.load %arg6[%c0, %c0_1] : memref<64x512xf32, #tpu.memory_space<vmem>>, vector<64x512xf32>
    %c0_2 = arith.constant 0 : index
    %c0_3 = arith.constant 0 : index
    %4 = vector.load %arg2[%c0_2, %c0_3] : memref<64x432xbf16, #tpu.memory_space<vmem>>, vector<64x432xbf16>
    %c0_4 = arith.constant 0 : index
    %c0_5 = arith.constant 0 : index
    %5 = vector.load %arg3[%c0_4, %c0_5] : memref<432x512xbf16, #tpu.memory_space<vmem>>, vector<432x512xbf16>
    %cst = arith.constant dense<0.000000e+00> : vector<64x512xf32>
    %6 = tpu.matmul %4, %5, %cst {dimension_numbers = #tpu.dot_dimension_numbers<[1], [0], [0], [1], [0, 0, 1, 1], [], []>} : vector<64x432xbf16>, vector<432x512xbf16>, vector<64x512xf32> -> vector<64x512xf32>
    %7 = arith.addf %3, %6 : vector<64x512xf32>
    %c0_6 = arith.constant 0 : index
    %c0_7 = arith.constant 0 : index
    %8 = vector.load %arg6[%c0_6, %c0_7] : memref<64x512xf32, #tpu.memory_space<vmem>>, vector<64x512xf32>
    tpu.vector_store %arg6[%c0_6, %c0_7], %7 {strides = array<i32>} : memref<64x512xf32, #tpu.memory_space<vmem>>, vector<64x512xf32>,
    %c0_i32_8 = arith.constant 0 : i32
    %9 = arith.cmpi eq, %arg1, %c0_i32_8 : i32
    %10 = arith.extui %9 : i1 to i32
    %c0_i32_9 = arith.constant 0 : i32
    %11 = arith.cmpi ne, %10, %c0_i32_9 : i32
    scf.if %11 {
      %c0_10 = arith.constant 0 : index
      %c0_11 = arith.constant 0 : index
      %12 = vector.load %arg6[%c0_10, %c0_11] : memref<64x512xf32, #tpu.memory_space<vmem>>, vector<64x512xf32>
      %c0_12 = arith.constant 0 : index
      %c0_13 = arith.constant 0 : index
      %13 = vector.load %arg4[%c0_12, %c0_13] : memref<64x1xf32, #tpu.memory_space<vmem>>, vector<64x1xf32>
      %14 = vector.broadcast %13 : vector<64x1xf32> to vector<64x512xf32>
      %15 = arith.addf %12, %14 : vector<64x512xf32>
      %cst_14 = arith.constant 0.000000e+00 : f32
      %16 = vector.broadcast %cst_14 : f32 to vector<64x512xf32>
      %17 = arith.maximumf %15, %16 : vector<64x512xf32>
      %c0_15 = arith.constant 0 : index
      %c0_16 = arith.constant 0 : index
      %18 = vector.load %arg5[%c0_15, %c0_16] : memref<64x512xf32, #tpu.memory_space<vmem>>, vector<64x512xf32>
      tpu.vector_store %arg5[%c0_15, %c0_16], %17 {strides = array<i32>} : memref<64x512xf32, #tpu.memory_space<vmem>>, vector<64x512xf32>,
    } else {
    }
    return
  }
  func.func @transform_0(%arg0: i32, %arg1: i32) -> (i32, i32) {
    %c0_i32 = arith.constant 0 : i32
    %c0_i32_0 = arith.constant 0 : i32
    return %c0_i32, %arg1 : i32, i32
  }
  func.func @transform_1(%arg0: i32, %arg1: i32) -> (i32, i32) {
    %c0_i32 = arith.constant 0 : i32
    return %arg1, %arg0 : i32, i32
  }
  func.func @transform_2(%arg0: i32, %arg1: i32) -> (i32, i32) {
    %c0_i32 = arith.constant 0 : i32
    %c0_i32_0 = arith.constant 0 : i32
    %c0_i32_1 = arith.constant 0 : i32
    return %c0_i32, %c0_i32_0 : i32, i32
  }
  func.func @transform_3(%arg0: i32, %arg1: i32) -> (i32, i32) {
    %c0_i32 = arith.constant 0 : i32
    %c0_i32_0 = arith.constant 0 : i32
    return %c0_i32, %arg0 : i32, i32
  }
}

</mosaic_0001>

<llo_original>
// kernel: tile.8
$region0: #{tile.8}
  #allocation0 [shape = 's32[1]{0}', space=sflag, size = 0x4, scoped, tag = 'scoped memory for tile.8']
  %s0 = inlined_call_operand.vmem [shape: f32[8], index: 0, kind: input, shape index: {}]
  %s1 = inlined_call_operand.vmem [shape: f32[8,8], index: 1, kind: output, shape index: {}]
  // Predicated region
  $region2: #{tile.8} parent=0 // pred_check
    _
  $region3: #{tile.8} parent=0 // pred_check_branch
    %3 = sbr.rel (0) target = $region5
  $region4: #{tile.8} parent=0 // pred_region
    _
  $region5: #{tile.8} parent=0 // pred_fallthru
    _
  %v4 = vld [vmem:[%s0] ss:$0 sm:$0xff]
  %5 = vst [vmem:[%s1] sm:$0xff] %v4

// kernel: tile.0
$region0: #{tile.0}
  %s0 = inlined_call_operand.vmem [shape: f32[8,8], index: 0, kind: input, shape index: {}]
  %s1 = inlined_call_operand.vmem [shape: f32[64,1], index: 1, kind: output, shape index: {}]
  %v2 = vld [vmem:[%s0] sm:$0xff]
  %vm3 = vcmask 7168
  %4 = vst.msk [vmem:[%s1] ss:$8 sm:$0xf] %vm3, %v2
  %5 = vst.msk [vmem:[%s1] ss:$8 sm:$0xf0] %vm3, %v2
  %v6 = vld [vmem:[%s0] sm:$0xff]
  %7 = vrot.lane.b32.xlu0 %v6, 127
  %v8 = vpop.permute.xlu0 %7
  %vm9 = vcmask 7168
  %s10 = scalar_lea.vmem %s1, 1
  %11 = vst.msk [vmem:[%s10] ss:$8 sm:$0xf] %vm9, %v8
  %s12 = scalar_lea.vmem %s1, 1
  %13 = vst.msk [vmem:[%s12] ss:$8 sm:$0xf0] %vm9, %v8
  %v14 = vld [vmem:[%s0] sm:$0xff]
  %15 = vrot.lane.b32.xlu0 %v14, 126
  %v16 = vpop.permute.xlu0 %15
  %vm17 = vcmask 7168
  %s18 = scalar_lea.vmem %s1, 2
  %19 = vst.msk [vmem:[%s18] ss:$8 sm:$0xf] %vm17, %v16
  %s20 = scalar_lea.vmem %s1, 2
  %21 = vst.msk [vmem:[%s20] ss:$8 sm:$0xf0] %vm17, %v16
  %v22 = vld [vmem:[%s0] sm:$0xff]
  %23 = vrot.lane.b32.xlu0 %v22, 125
  %v24 = vpop.permute.xlu0 %23
  %vm25 = vcmask 7168
  %s26 = scalar_lea.vmem %s1, 3
  %27 = vst.msk [vmem:[%s26] ss:$8 sm:$0xf] %vm25, %v24
  %s28 = scalar_lea.vmem %s1, 3
  %29 = vst.msk [vmem:[%s28] ss:$8 sm:$0xf0] %vm25, %v24
  %v30 = vld [vmem:[%s0] sm:$0xff]
  %31 = vrot.lane.b32.xlu0 %v30, 124
  %v32 = vpop.permute.xlu0 %31
  %vm33 = vcmask 7168
  %s34 = scalar_lea.vmem %s1, 4
  %35 = vst.msk [vmem:[%s34] ss:$8 sm:$0xf] %vm33, %v32
  %s36 = scalar_lea.vmem %s1, 4
  %37 = vst.msk [vmem:[%s36] ss:$8 sm:$0xf0] %vm33, %v32
  %v38 = vld [vmem:[%s0] sm:$0xff]
  %39 = vrot.lane.b32.xlu0 %v38, 123
  %v40 = vpop.permute.xlu0 %39
  %vm41 = vcmask 7168
  %s42 = scalar_lea.vmem %s1, 5
  %43 = vst.msk [vmem:[%s42] ss:$8 sm:$0xf] %vm41, %v40
  %s44 = scalar_lea.vmem %s1, 5
  %45 = vst.msk [vmem:[%s44] ss:$8 sm:$0xf0] %vm41, %v40
  %v46 = vld [vmem:[%s0] sm:$0xff]
  %47 = vrot.lane.b32.xlu0 %v46, 122
  %v48 = vpop.permute.xlu0 %47
  %vm49 = vcmask 7168
  %s50 = scalar_lea.vmem %s1, 6
  %51 = vst.msk [vmem:[%s50] ss:$8 sm:$0xf] %vm49, %v48
  %s52 = scalar_lea.vmem %s1, 6
  %53 = vst.msk [vmem:[%s52] ss:$8 sm:$0xf0] %vm49, %v48
  %v54 = vld [vmem:[%s0] sm:$0xff]
  %55 = vrot.lane.b32.xlu0 %v54, 121
  %v56 = vpop.permute.xlu0 %55
  %vm57 = vcmask 7168
  %s58 = scalar_lea.vmem %s1, 7
  %59 = vst.msk [vmem:[%s58] ss:$8 sm:$0xf] %vm57, %v56
  %s60 = scalar_lea.vmem %s1, 7
  %61 = vst.msk [vmem:[%s60] ss:$8 sm:$0xf0] %vm57, %v56

// kernel: conv_t_conv_forward.2
$region0: #{conv_t_conv_forward.2}
  #allocation0 [shape = 'u32[]', space=smem, size = 0x4, offset = 0x4, fixed_abs, tag = 'smem constant byte address 0x4 - core index']
  #allocation1 [shape = 'u32[144,128]{1,0:T(1,128)}', space=vmem, size = 0x12000, scoped, tag = 'internal scratch']
  #allocation2 [shape = 'f32[16,512]{1,0:T(8,128)}', space=vmem, size = 0x8000, scoped, tag = 'scratch operand']
  %s0 = inlined_call_operand.vmem [shape: bf16[16,108], index: 0, kind: input, shape index: {}]
  %s1 = inlined_call_operand.vmem [shape: bf16[108,1024], index: 1, kind: input, shape index: {}]
  %s2 = inlined_call_operand.vmem [shape: f32[16,1], index: 2, kind: input, shape index: {}]
  %s3 = inlined_call_operand.vmem [shape: bf16[16,1024], index: 3, kind: output, shape index: {}]
  %s4 = sld [smem:[#allocation0]]
  $region95: #{conv_t_conv_forward.2} parent=0
    _
  %s6 = ssub.s32 1, %s4
  %s7 = scalar_select 0, %s6, %s4
  $region1: #{conv_t_conv_forward.2} parent=0
    #allocation3 [shape = 'u8[229376]{0}', space=vmem, size = 0x38000, scoped, tag = 'input window, operand 1']
    #allocation4 [shape = 'u8[32768]{0}', space=vmem, size = 0x8000, scoped, tag = 'output window, operand 0']
    loop: start=0, step=1, limit=4
    $region2: #{conv_t_conv_forward.2} parent=1 // loop_pre_header
      _
    $region3: #{conv_t_conv_forward.2} parent=1 // loop_header
      %s9 = sphi 0, %s13
      %p10 = scmp.ge.s32.totalorder %s9, 4
      %s16 = sphi 0, %s28
      %s17 = sphi 0, %s24
      %s18 = sphi 0, %s16
      %s19 = sphi 0, %s17
      %s20 = sphi 0, %s18
      %s21 = sphi 0, %s19
      %s31 = sphi 0, %s33
      %s34 = sphi 0, %s31
      %s35 = sphi 0, %s34
      %s51 = sphi 0, %s35
      %s59 = sphi 0, %s61
      %s62 = sphi 0, %s59
      %s63 = sphi 0, %s62
      %s79 = sphi 0, %s63
      %s83 = sphi 0, %s83
      %s85 = sphi 0, %s83
      %s86 = sphi 0, %s85
      %s100 = sphi 0, %s86
      %s106 = sphi 0, %s108
      %s109 = sphi 0, %s106
      %s110 = sphi 0, %s109
      %s126 = sphi 0, %s110
    $region4: #{conv_t_conv_forward.2} parent=1 // loop_header_branch
      %12 = sbr.rel (%p10) target = $region8
    $region5: #{conv_t_conv_forward.2} parent=1 // loop_body
      %s14 = ssub.s32 %s9, 1
      %s15 = ssub.s32 %s9, 2
      %s22 = sadd.s32 1, %s17
      %p23 = scmp.ge.s32.totalorder %s22, 1
      %s24 = scalar_select %p23, 0, %s22
      %s25 = sadd.s32 1, %s16
      %s26 = scalar_select %p23, %s25, %s16
      %p27 = scmp.ge.s32.totalorder %s26, 2
      %s28 = scalar_select %p27, 0, %s26
      %s29 = ssub.s32 %s17, %s24
      %p30 = scmp.eq.s32.totalorder %s29, 0
      %s32 = sadd.s32 %s31, 1
      %s33 = scalar_select %p30, %s31, %s32
      %p36 = pneg %p30
      %p37 = scmp.eq.s32.totalorder %s9, 1
      %p38 = por %p36, %p37
      %p39 = scmp.ne.s32.totalorder %s31, %s34
      %p40 = scmp.eq.s32.totalorder %s9, 0
      %p41 = por %p39, %p40
      %p42 = scmp.ne.s32.totalorder %s31, %s34
      %p43 = scmp.eq.s32.totalorder %s14, 1
      %p44 = por %p42, %p43
      %p45 = scmp.ne.s32.totalorder %s34, %s35
      %p46 = scmp.eq.s32.totalorder %s14, 0
      %p47 = por %p45, %p46
      %p48 = scmp.ne.s32.totalorder %s34, %s35
      %p49 = scmp.eq.s32.totalorder %s15, 1
      %p50 = por %p48, %p49
      %p52 = scmp.ne.s32.totalorder %s35, %s51
      %p53 = scmp.eq.s32.totalorder %s15, 0
      %p54 = por %p52, %p53
      %s55 = ssub.s32 %s17, %s24
      %s56 = ssub.s32 %s16, %s28
      %s57 = sor.u32 %s55, %s56
      %p58 = scmp.eq.s32.totalorder %s57, 0
      %s60 = sadd.s32 %s59, 1
      %s61 = scalar_select %p58, %s59, %s60
      %p64 = pneg %p58
      %p65 = scmp.eq.s32.totalorder %s9, 1
      %p66 = por %p64, %p65
      %p67 = scmp.ne.s32.totalorder %s59, %s62
      %p68 = scmp.eq.s32.totalorder %s9, 0
      %p69 = por %p67, %p68
      %p70 = scmp.ne.s32.totalorder %s59, %s62
      %p71 = scmp.eq.s32.totalorder %s14, 1
      %p72 = por %p70, %p71
      %p73 = scmp.ne.s32.totalorder %s62, %s63
      %p74 = scmp.eq.s32.totalorder %s14, 0
      %p75 = por %p73, %p74
      %p76 = scmp.ne.s32.totalorder %s62, %s63
      %p77 = scmp.eq.s32.totalorder %s15, 1
      %p78 = por %p76, %p77
      %p80 = scmp.ne.s32.totalorder %s63, %s79
      %p81 = scmp.eq.s32.totalorder %s15, 0
      %p82 = por %p80, %p81
      %s84 = sadd.s32 %s83, 1
      %p87 = scmp.eq.s32.totalorder %s9, 1
      %p88 = scmp.ne.s32.totalorder %s83, %s85
      %p89 = scmp.eq.s32.totalorder %s9, 0
      %p90 = por %p88, %p89
      %p91 = scmp.ne.s32.totalorder %s83, %s85
      %p92 = scmp.eq.s32.totalorder %s14, 1
      %p93 = por %p91, %p92
      %p94 = scmp.ne.s32.totalorder %s85, %s86
      %p95 = scmp.eq.s32.totalorder %s14, 0
      %p96 = por %p94, %p95
      %p97 = scmp.ne.s32.totalorder %s85, %s86
      %p98 = scmp.eq.s32.totalorder %s15, 1
      %p99 = por %p97, %p98
      %p101 = scmp.ne.s32.totalorder %s86, %s100
      %p102 = scmp.eq.s32.totalorder %s15, 0
      %p103 = por %p101, %p102
      %s104 = ssub.s32 %s16, %s28
      %p105 = scmp.eq.s32.totalorder %s104, 0
      %s107 = sadd.s32 %s106, 1
      %s108 = scalar_select %p105, %s106, %s107
      %p111 = pneg %p105
      %p112 = scmp.eq.s32.totalorder %s9, 1
      %p113 = por %p111, %p112
      %p114 = scmp.ne.s32.totalorder %s106, %s109
      %p115 = scmp.eq.s32.totalorder %s9, 0
      %p116 = por %p114, %p115
      %p117 = scmp.ne.s32.totalorder %s106, %s109
      %p118 = scmp.eq.s32.totalorder %s14, 1
      %p119 = por %p117, %p118
      %p120 = scmp.ne.s32.totalorder %s109, %s110
      %p121 = scmp.eq.s32.totalorder %s14, 0
      %p122 = por %p120, %p121
      %p123 = scmp.ne.s32.totalorder %s109, %s110
      %p124 = scmp.eq.s32.totalorder %s15, 1
      %p125 = por %p123, %p124
      %p127 = scmp.ne.s32.totalorder %s110, %s126
      %p128 = scmp.eq.s32.totalorder %s15, 0
      %p129 = por %p127, %p128
      %p130 = scmp.le.s32.totalorder 1, %s9
      %p131 = scmp.lt.s32.totalorder %s9, 3
      %p132 = pnand %p130, %p131
      %p133 = pneg %p132
      // Predicated region
      $region9: #{conv_t_conv_forward.2} parent=5 // pred_check
        _
      $region10: #{conv_t_conv_forward.2} parent=5 // pred_check_branch
        %135 = sbr.rel (%p132) target = $region12
      $region11: #{conv_t_conv_forward.2} parent=5 // pred_region
        %s136 = ssub.s32 %s9, 1
        // Predicated region
        $region13: #{conv_t_conv_forward.2} parent=11 // pred_check
          %p137 = pneg %p47
        $region14: #{conv_t_conv_forward.2} parent=11 // pred_check_branch
          %139 = sbr.rel (%p137) target = $region16
        $region15: #{conv_t_conv_forward.2} parent=11 // pred_region
          %p140 = scmp.lt.s32.totalorder %s19, 0
          %s141 = scalar_select %p140, %s19, 0
          %s142 = smul.addr %s141, 4
          %s143 = scalar_lea.vmem %s0, %s142
        $region16: #{conv_t_conv_forward.2} parent=11 // pred_fallthru
          _
        // Predicated region
        $region17: #{conv_t_conv_forward.2} parent=11 // pred_check
          %p144 = pneg %p96
        $region18: #{conv_t_conv_forward.2} parent=11 // pred_check_branch
          %146 = sbr.rel (%p144) target = $region20
        $region19: #{conv_t_conv_forward.2} parent=11 // pred_region
          _
        $region20: #{conv_t_conv_forward.2} parent=11 // pred_fallthru
          _
      $region12: #{conv_t_conv_forward.2} parent=5 // pred_fallthru
        _
      %p147 = scmp.lt.s32.totalorder %s9, 2
      // Predicated region
      $region21: #{conv_t_conv_forward.2} parent=5 // pred_check
        %p148 = pneg %p147
      $region22: #{conv_t_conv_forward.2} parent=5 // pred_check_branch
        %150 = sbr.rel (%p148) target = $region24
      $region23: #{conv_t_conv_forward.2} parent=5 // pred_region
        // Predicated region
        $region25: #{conv_t_conv_forward.2} parent=23 // pred_check
          %p151 = pneg %p69
        $region26: #{conv_t_conv_forward.2} parent=23 // pred_check_branch
          %153 = sbr.rel (%p151) target = $region28
        $region27: #{conv_t_conv_forward.2} parent=23 // pred_region
          %s154 = sand.u32 %s59, 1
          %s155 = sand.u32 %s59, 1
          %s156 = smul.addr %s155, 224
          %s157 = scalar_lea.vmem [#allocation3], %s156
          %s158 = smul.u32 14, %s17
          %s159 = smul.u32 4, %s16
          %s160 = smul.addr %s158, 8
          %s161 = sadd.s32 %s159, %s160
          %s162 = smul.addr %s161, 4
          %s163 = scalar_lea.vmem %s1, %s162
          // Predicated region
          $region29: #{conv_t_conv_forward.2} parent=27 // pred_check
            _
          $region30: #{conv_t_conv_forward.2} parent=27 // pred_check_branch
            %165 = sbr.rel (0) target = $region32
          $region31: #{conv_t_conv_forward.2} parent=27 // pred_region
            // Predicated region
            $region33: #{conv_t_conv_forward.2} parent=31 // pred_check
              _
            $region34: #{conv_t_conv_forward.2} parent=31 // pred_check_branch
              %167 = sbr.rel (0) target = $region36
            $region35: #{conv_t_conv_forward.2} parent=31 // pred_region
              loop: start=0, step=1, limit=1
              $region37: #{conv_t_conv_forward.2} parent=35 // loop_pre_header
                _
              $region38: #{conv_t_conv_forward.2} parent=35 // loop_header
                %s169 = sphi 0, %s173
                %p170 = scmp.ge.s32.totalorder %s169, 1
                %s174 = sphi %s163, %s163
                %s175 = sphi %s157, %s157
              $region39: #{conv_t_conv_forward.2} parent=35 // loop_header_branch
                %172 = sbr.rel (%p170) target = $region43
              $region40: #{conv_t_conv_forward.2} parent=35 // loop_body
                %v176 = vld [vmem:[%s174] sm:$0xff]
                %177 = vst [vmem:[%s175] sm:$0xff] %v176
                %v178 = vld [vmem:[%s174 + $0x8] sm:$0xff]
                %179 = vst [vmem:[%s175 + $0x8] sm:$0xff] %v178
                %v180 = vld [vmem:[%s174 + $0x20] sm:$0xff]
                %181 = vst [vmem:[%s175 + $0x10] sm:$0xff] %v180
                %v182 = vld [vmem:[%s174 + $0x28] sm:$0xff]
                %183 = vst [vmem:[%s175 + $0x18] sm:$0xff] %v182
                %v184 = vld [vmem:[%s174 + $0x40] sm:$0xff]
                %185 = vst [vmem:[%s175 + $0x20] sm:$0xff] %v184
                %v186 = vld [vmem:[%s174 + $0x48] sm:$0xff]
                %187 = vst [vmem:[%s175 + $0x28] sm:$0xff] %v186
                %v188 = vld [vmem:[%s174 + $0x60] sm:$0xff]
                %189 = vst [vmem:[%s175 + $0x30] sm:$0xff] %v188
                %v190 = vld [vmem:[%s174 + $0x68] sm:$0xff]
                %191 = vst [vmem:[%s175 + $0x38] sm:$0xff] %v190
                %v192 = vld [vmem:[%s174 + $0x80] sm:$0xff]
                %193 = vst [vmem:[%s175 + $0x40] sm:$0xff] %v192
                %v194 = vld [vmem:[%s174 + $0x88] sm:$0xff]
                %195 = vst [vmem:[%s175 + $0x48] sm:$0xff] %v194
                %v196 = vld [vmem:[%s174 + $0xa0] sm:$0xff]
                %197 = vst [vmem:[%s175 + $0x50] sm:$0xff] %v196
                %v198 = vld [vmem:[%s174 + $0xa8] sm:$0xff]
                %199 = vst [vmem:[%s175 + $0x58] sm:$0xff] %v198
                %v200 = vld [vmem:[%s174 + $0xc0] sm:$0xff]
                %201 = vst [vmem:[%s175 + $0x60] sm:$0xff] %v200
                %v202 = vld [vmem:[%s174 + $0xc8] sm:$0xff]
                %203 = vst [vmem:[%s175 + $0x68] sm:$0xff] %v202
                %v204 = vld [vmem:[%s174 + $0xe0] sm:$0xff]
                %205 = vst [vmem:[%s175 + $0x70] sm:$0xff] %v204
                %v206 = vld [vmem:[%s174 + $0xe8] sm:$0xff]
                %207 = vst [vmem:[%s175 + $0x78] sm:$0xff] %v206
                %v208 = vld [vmem:[%s174 + $0x100] sm:$0xff]
                %209 = vst [vmem:[%s175 + $0x80] sm:$0xff] %v208
                %v210 = vld [vmem:[%s174 + $0x108] sm:$0xff]
                %211 = vst [vmem:[%s175 + $0x88] sm:$0xff] %v210
                %v212 = vld [vmem:[%s174 + $0x120] sm:$0xff]
                %213 = vst [vmem:[%s175 + $0x90] sm:$0xff] %v212
                %v214 = vld [vmem:[%s174 + $0x128] sm:$0xff]
                %215 = vst [vmem:[%s175 + $0x98] sm:$0xff] %v214
                %v216 = vld [vmem:[%s174 + $0x140] sm:$0xff]
                %217 = vst [vmem:[%s175 + $0xa0] sm:$0xff] %v216
                %v218 = vld [vmem:[%s174 + $0x148] sm:$0xff]
                %219 = vst [vmem:[%s175 + $0xa8] sm:$0xff] %v218
                %v220 = vld [vmem:[%s174 + $0x160] sm:$0xff]
                %221 = vst [vmem:[%s175 + $0xb0] sm:$0xff] %v220
                %v222 = vld [vmem:[%s174 + $0x168] sm:$0xff]
                %223 = vst [vmem:[%s175 + $0xb8] sm:$0xff] %v222
                %v224 = vld [vmem:[%s174 + $0x180] sm:$0xff]
                %225 = vst [vmem:[%s175 + $0xc0] sm:$0xff] %v224
                %v226 = vld [vmem:[%s174 + $0x188] sm:$0xff]
                %227 = vst [vmem:[%s175 + $0xc8] sm:$0xff] %v226
                %v228 = vld [vmem:[%s174 + $0x1a0] sm:$0xff]
                %229 = vst [vmem:[%s175 + $0xd0] sm:$0xff] %v228
                %v230 = vld [vmem:[%s174 + $0x1a8] sm:$0xff]
                %231 = vst [vmem:[%s175 + $0xd8] sm:$0xff] %v230
              $region41: #{conv_t_conv_forward.2} parent=35 // loop_footer
                %s173 = sadd.s32 1, %s169
              $region42: #{conv_t_conv_forward.2} parent=35 // loop_footer_branch
                %168 = sbr.rel target = $region38
              $region43: #{conv_t_conv_forward.2} parent=35 // loop_exit
                _
            $region36: #{conv_t_conv_forward.2} parent=31 // pred_fallthru
              _
            // Predicated region
            $region44: #{conv_t_conv_forward.2} parent=31 // pred_check
              _
            $region45: #{conv_t_conv_forward.2} parent=31 // pred_check_branch
              %233 = sbr.rel target = $region47
            $region46: #{conv_t_conv_forward.2} parent=31 // pred_region
              _
            $region47: #{conv_t_conv_forward.2} parent=31 // pred_fallthru
              _
          $region32: #{conv_t_conv_forward.2} parent=27 // pred_fallthru
            _
          %234 = vnop
        $region28: #{conv_t_conv_forward.2} parent=23 // pred_fallthru
          _
      $region24: #{conv_t_conv_forward.2} parent=5 // pred_fallthru
        _
      %p235 = scmp.le.s32.totalorder 1, %s9
      %p236 = scmp.lt.s32.totalorder %s9, 3
      %p237 = pnand %p235, %p236
      %p238 = pneg %p237
      // Predicated region
      $region48: #{conv_t_conv_forward.2} parent=5 // pred_check
        _
      $region49: #{conv_t_conv_forward.2} parent=5 // pred_check_branch
        %240 = sbr.rel (%p237) target = $region51
      $region50: #{conv_t_conv_forward.2} parent=5 // pred_region
        %s241 = ssub.s32 %s9, 1
        %s242 = sand.u32 %s62, 1
        %s243 = sand.u32 %s62, 1
        %s244 = smul.addr %s243, 224
        %s245 = scalar_lea.vmem [#allocation3], %s244
        // Predicated region
        $region52: #{conv_t_conv_forward.2} parent=50 // pred_check
          %p246 = pneg %p75
        $region53: #{conv_t_conv_forward.2} parent=50 // pred_check_branch
          %248 = sbr.rel (%p246) target = $region55
        $region54: #{conv_t_conv_forward.2} parent=50 // pred_region
          _
        $region55: #{conv_t_conv_forward.2} parent=50 // pred_fallthru
          _
        %p249 = scmp.lt.s32.totalorder %s19, 0
        %s250 = scalar_select %p249, %s19, 0
        %s251 = smul.addr %s250, 4
        %s252 = scalar_lea.vmem %s0, %s251
        %p253 = pneg %p47
        %p254 = pneg %p44
        %s255 = sand.u32 %s62, 1
        %s256 = sand.u32 %s62, 1
        %s257 = smul.addr %s256, 224
        %s258 = scalar_lea.vmem [#allocation3], %s257
        %p259 = pneg %p75
        %p260 = pneg %p72
        %p261 = pneg %p96
        %p262 = pneg %p93
        %p263 = pneg %p122
        %p264 = pneg %p119
        %s265 = sand.u32 %s109, 1
        %s266 = sand.u32 %s109, 1
        %s267 = smul.addr %s266, 32
        %s268 = scalar_lea.vmem [#allocation4], %s267
        %p269 = scmp.lt.s32.totalorder %s19, 0
        %s270 = scalar_select %p269, %s19, 0
        %s271 = smul.addr %s270, 4
        %s272 = scalar_lea.vmem %s0, %s271
        %s273 = smul.u32 14, %s19
        %s274 = smul.u32 4, %s18
        %s275 = smul.u32 4, %s18
        %p277 = scmp.eq.s32.totalorder %s19, 0
        // Predicated region
        $region56: #{conv_t_conv_forward.2} parent=50 // pred_check
          %p278 = pneg %p277
        $region57: #{conv_t_conv_forward.2} parent=50 // pred_check_branch
          %280 = sbr.rel (%p278) target = $region59
        $region58: #{conv_t_conv_forward.2} parent=50 // pred_region
          %281 = vst [vmem:[#allocation2] sm:$0xff] 0.0
          %282 = vst [vmem:[#allocation2 + $0x8] sm:$0xff] 0.0
          %283 = vst [vmem:[#allocation2 + $0x10] sm:$0xff] 0.0
          %284 = vst [vmem:[#allocation2 + $0x18] sm:$0xff] 0.0
          %285 = vst [vmem:[#allocation2 + $0x20] sm:$0xff] 0.0
          %286 = vst [vmem:[#allocation2 + $0x28] sm:$0xff] 0.0
          %287 = vst [vmem:[#allocation2 + $0x30] sm:$0xff] 0.0
          %288 = vst [vmem:[#allocation2 + $0x38] sm:$0xff] 0.0
        $region59: #{conv_t_conv_forward.2} parent=50 // pred_fallthru
          _
        %v289 = vld [vmem:[#allocation2] sm:$0xff]
        %v290 = vld [vmem:[#allocation2 + $0x8] sm:$0xff]
        %v291 = vld [vmem:[#allocation2 + $0x10] sm:$0xff]
        %v292 = vld [vmem:[#allocation2 + $0x18] sm:$0xff]
        %v293 = vld [vmem:[#allocation2 + $0x20] sm:$0xff]
        %v294 = vld [vmem:[#allocation2 + $0x28] sm:$0xff]
        %v295 = vld [vmem:[#allocation2 + $0x30] sm:$0xff]
        %v296 = vld [vmem:[#allocation2 + $0x38] sm:$0xff]
        %v297 = vld [vmem:[%s272] sm:$0xf]
        %v298 = vld [vmem:[%s272 + $0x4] sm:$0xf]
        %v299 = vld [vmem:[%s245] sm:$0xff]
        %v300 = vld [vmem:[%s245 + $0x8] sm:$0xff]
        %v301 = vld [vmem:[%s245 + $0x10] sm:$0xff]
        %v302 = vld [vmem:[%s245 + $0x18] sm:$0xff]
        %v303 = vld [vmem:[%s245 + $0x20] sm:$0xff]
        %v304 = vld [vmem:[%s245 + $0x28] sm:$0xff]
        %v305 = vld [vmem:[%s245 + $0x30] sm:$0xff]
        %v306 = vld [vmem:[%s245 + $0x38] sm:$0xff]
        %v307 = vld [vmem:[%s245 + $0x40] sm:$0xff]
        %v308 = vld [vmem:[%s245 + $0x48] sm:$0xff]
        %v309 = vld [vmem:[%s245 + $0x50] sm:$0xff]
        %v310 = vld [vmem:[%s245 + $0x58] sm:$0xff]
        %v311 = vld [vmem:[%s245 + $0x60] sm:$0xff]
        %v312 = vld [vmem:[%s245 + $0x68] sm:$0xff]
        %v313 = vld [vmem:[%s245 + $0x70] sm:$0xff]
        %v314 = vld [vmem:[%s245 + $0x78] sm:$0xff]
        %v315 = vld [vmem:[%s245 + $0x80] sm:$0xff]
        %v316 = vld [vmem:[%s245 + $0x88] sm:$0xff]
        %v317 = vld [vmem:[%s245 + $0x90] sm:$0xff]
        %v318 = vld [vmem:[%s245 + $0x98] sm:$0xff]
        %v319 = vld [vmem:[%s245 + $0xa0] sm:$0xff]
        %v320 = vld [vmem:[%s245 + $0xa8] sm:$0xff]
        %v321 = vld [vmem:[%s245 + $0xb0] sm:$0xff]
        %v322 = vld [vmem:[%s245 + $0xb8] sm:$0xff]
        %v323 = vld [vmem:[%s245 + $0xc0] sm:$0xff]
        %v324 = vld [vmem:[%s245 + $0xc8] sm:$0xff]
        %v325 = vld [vmem:[%s245 + $0xd0] sm:$0x33]
        %v326 = vld [vmem:[%s245 + $0xd8] sm:$0x33]
        %v329 = vunpack.c.l.b16 %v297
        %v330 = vunpack.c.l.b16 %v298
        %v331 = vpack.c.b16 %v330, %v329
        %v360 = vunpack.c.l.b16 %v299
        %v361 = vunpack.c.h.b16 %v299
        %v362 = vunpack.c.l.b16 %v300
        %v363 = vunpack.c.h.b16 %v300
        %v364 = vunpack.c.l.b16 %v301
        %v365 = vunpack.c.h.b16 %v301
        %v366 = vunpack.c.l.b16 %v302
        %v367 = vunpack.c.h.b16 %v302
        %v368 = vunpack.c.l.b16 %v303
        %v369 = vunpack.c.h.b16 %v303
        %v370 = vunpack.c.l.b16 %v304
        %v371 = vunpack.c.h.b16 %v304
        %v372 = vunpack.c.l.b16 %v305
        %v373 = vunpack.c.h.b16 %v305
        %v374 = vunpack.c.l.b16 %v306
        %v375 = vunpack.c.h.b16 %v306
        %v376 = vunpack.c.l.b16 %v307
        %v377 = vunpack.c.h.b16 %v307
        %v378 = vunpack.c.l.b16 %v308
        %v379 = vunpack.c.h.b16 %v308
        %v380 = vunpack.c.l.b16 %v309
        %v381 = vunpack.c.h.b16 %v309
        %v382 = vunpack.c.l.b16 %v310
        %v383 = vunpack.c.h.b16 %v310
        %v384 = vunpack.c.l.b16 %v311
        %v385 = vunpack.c.h.b16 %v311
        %v386 = vunpack.c.l.b16 %v312
        %v387 = vunpack.c.h.b16 %v312
        %v388 = vunpack.c.l.b16 %v313
        %v389 = vunpack.c.h.b16 %v313
        %v390 = vunpack.c.l.b16 %v314
        %v391 = vunpack.c.h.b16 %v314
        %v392 = vunpack.c.l.b16 %v315
        %v393 = vunpack.c.h.b16 %v315
        %v394 = vunpack.c.l.b16 %v316
        %v395 = vunpack.c.h.b16 %v316
        %v396 = vunpack.c.l.b16 %v317
        %v397 = vunpack.c.h.b16 %v317
        %v398 = vunpack.c.l.b16 %v318
        %v399 = vunpack.c.h.b16 %v318
        %v400 = vunpack.c.l.b16 %v319
        %v401 = vunpack.c.h.b16 %v319
        %v402 = vunpack.c.l.b16 %v320
        %v403 = vunpack.c.h.b16 %v320
        %v404 = vunpack.c.l.b16 %v321
        %v405 = vunpack.c.h.b16 %v321
        %v406 = vunpack.c.l.b16 %v322
        %v407 = vunpack.c.h.b16 %v322
        %v408 = vunpack.c.l.b16 %v323
        %v409 = vunpack.c.h.b16 %v323
        %v410 = vunpack.c.l.b16 %v324
        %v411 = vunpack.c.h.b16 %v324
        %v412 = vunpack.c.l.b16 %v325
        %v413 = vunpack.c.h.b16 %v325
        %v414 = vunpack.c.l.b16 %v326
        %v415 = vunpack.c.h.b16 %v326
        %v416 = vpack.c.b16 %v364, %v360
        %v417 = vpack.c.b16 %v365, %v361
        %v418 = vpack.c.b16 %v366, %v362
        %v419 = vpack.c.b16 %v367, %v363
        %v420 = vpack.c.b16 %v372, %v368
        %v421 = vpack.c.b16 %v373, %v369
        %v422 = vpack.c.b16 %v374, %v370
        %v423 = vpack.c.b16 %v375, %v371
        %v424 = vpack.c.b16 %v380, %v376
        %v425 = vpack.c.b16 %v381, %v377
        %v426 = vpack.c.b16 %v382, %v378
        %v427 = vpack.c.b16 %v383, %v379
        %v428 = vpack.c.b16 %v388, %v384
        %v429 = vpack.c.b16 %v389, %v385
        %v430 = vpack.c.b16 %v390, %v386
        %v431 = vpack.c.b16 %v391, %v387
        %v432 = vpack.c.b16 %v396, %v392
        %v433 = vpack.c.b16 %v397, %v393
        %v434 = vpack.c.b16 %v398, %v394
        %v435 = vpack.c.b16 %v399, %v395
        %v436 = vpack.c.b16 %v404, %v400
        %v437 = vpack.c.b16 %v405, %v401
        %v438 = vpack.c.b16 %v406, %v402
        %v439 = vpack.c.b16 %v407, %v403
        %v440 = vpack.c.b16 %v412, %v408
        %v441 = vpack.c.b16 %v413, %v409
        %v442 = vpack.c.b16 %v414, %v410
        %v443 = vpack.c.b16 %v415, %v411
        %vm468 = vcmask 883712
        %v470 = vsel %vm468, %v331, 0
        %vm472 = vcmask 1045504
        %v474 = vsel %vm472, %v440, 0
        %v477 = vsel %vm472, %v441, 0
        %v480 = vsel %vm472, %v442, 0
        %v483 = vsel %vm472, %v443, 0
        %485 = vmatprep.subr.bf16.mxu0 %v417
        %486 = vmatpush1.bf16.msra.mxu0 %v416
        %487 = vmatprep.subr.bf16.mxu0 %v421
        %488 = vmatpush1.bf16.msra.mxu0 %v420
        %489 = vmatprep.subr.bf16.mxu0 %v425
        %490 = vmatpush1.bf16.msra.mxu0 %v424
        %491 = vmatprep.subr.bf16.mxu0 %v429
        %492 = vmatpush1.bf16.msra.mxu0 %v428
        %493 = vmatprep.subr.bf16.mxu0 %v433
        %494 = vmatpush1.bf16.msra.mxu0 %v432
        %495 = vmatprep.subr.bf16.mxu0 %v437
        %496 = vmatpush1.bf16.msra.mxu0 %v436
        %497 = vmatprep.subr.bf16.mxu0 %v477
        %498 = vmatpush1.bf16.msra.mxu0 %v474
        %499 = vmatprep.subr.bf16.mxu0 0
        %500 = vmatpush1.bf16.msra.mxu0 0
        %501 = vmatprep.subr.bf16.mxu0 0
        %502 = vmatpush1.bf16.msra.mxu0 0
        %503 = vmatprep.subr.bf16.mxu0 0
        %504 = vmatpush1.bf16.msra.mxu0 0
        %505 = vmatprep.subr.bf16.mxu0 0
        %506 = vmatpush1.bf16.msra.mxu0 0
        %507 = vmatprep.subr.bf16.mxu0 0
        %508 = vmatpush1.bf16.msra.mxu0 0
        %509 = vmatprep.subr.bf16.mxu0 0
        %510 = vmatpush1.bf16.msra.mxu0 0
        %511 = vmatprep.subr.bf16.mxu0 0
        %512 = vmatpush1.bf16.msra.mxu0 0
        %513 = vmatprep.subr.bf16.mxu0 0
        %514 = vmatpush1.bf16.msra.mxu0 0
        %515 = vmatprep.subr.bf16.mxu0 0
        %516 = vmatpush1.bf16.msra.mxu0 0
        %517 = vmatprep.mubr.bf16.mxu0 0
        %518 = vmatmul.mubr.bf16.gmra.mrb[0].mxu0 %v470
        %v519 = vpop.f32.mrb[0].mxu0
        %v520 = vadd.f32 0.0, %v519
        %v521 = vpop.f32.mrb[0].mxu0
        %v522 = vadd.f32 0.0, %v521
        %v523 = vpop.f32.mrb[0].mxu0
        %v524 = vadd.f32 0.0, %v523
        %v525 = vpop.f32.mrb[0].mxu0
        %v526 = vadd.f32 0.0, %v525
        %527 = vdwg.mxu0
        %528 = vmatprep.subr.bf16.mxu0 %v419
        %529 = vmatpush1.bf16.msra.mxu0 %v418
        %530 = vmatprep.subr.bf16.mxu0 %v423
        %531 = vmatpush1.bf16.msra.mxu0 %v422
        %532 = vmatprep.subr.bf16.mxu0 %v427
        %533 = vmatpush1.bf16.msra.mxu0 %v426
        %534 = vmatprep.subr.bf16.mxu0 %v431
        %535 = vmatpush1.bf16.msra.mxu0 %v430
        %536 = vmatprep.subr.bf16.mxu0 %v435
        %537 = vmatpush1.bf16.msra.mxu0 %v434
        %538 = vmatprep.subr.bf16.mxu0 %v439
        %539 = vmatpush1.bf16.msra.mxu0 %v438
        %540 = vmatprep.subr.bf16.mxu0 %v483
        %541 = vmatpush1.bf16.msra.mxu0 %v480
        %542 = vmatprep.subr.bf16.mxu0 0
        %543 = vmatpush1.bf16.msra.mxu0 0
        %544 = vmatprep.subr.bf16.mxu0 0
        %545 = vmatpush1.bf16.msra.mxu0 0
        %546 = vmatprep.subr.bf16.mxu0 0
        %547 = vmatpush1.bf16.msra.mxu0 0
        %548 = vmatprep.subr.bf16.mxu0 0
        %549 = vmatpush1.bf16.msra.mxu0 0
        %550 = vmatprep.subr.bf16.mxu0 0
        %551 = vmatpush1.bf16.msra.mxu0 0
        %552 = vmatprep.subr.bf16.mxu0 0
        %553 = vmatpush1.bf16.msra.mxu0 0
        %554 = vmatprep.subr.bf16.mxu0 0
        %555 = vmatpush1.bf16.msra.mxu0 0
        %556 = vmatprep.subr.bf16.mxu0 0
        %557 = vmatpush1.bf16.msra.mxu0 0
        %558 = vmatprep.subr.bf16.mxu0 0
        %559 = vmatpush1.bf16.msra.mxu0 0
        %560 = vmatprep.mubr.bf16.mxu0 0
        %561 = vmatmul.mubr.bf16.gmra.mrb[0].mxu0 %v470
        %v562 = vpop.f32.mrb[0].mxu0
        %v563 = vadd.f32 0.0, %v562
        %v564 = vpop.f32.mrb[0].mxu0
        %v565 = vadd.f32 0.0, %v564
        %v566 = vpop.f32.mrb[0].mxu0
        %v567 = vadd.f32 0.0, %v566
        %v568 = vpop.f32.mrb[0].mxu0
        %v569 = vadd.f32 0.0, %v568
        %570 = vdwg.mxu0
        %v571 = vadd.f32 %v289, %v520
        %v572 = vadd.f32 %v290, %v522
        %v573 = vadd.f32 %v291, %v563
        %v574 = vadd.f32 %v292, %v565
        %v575 = vadd.f32 %v293, %v524
        %v576 = vadd.f32 %v294, %v526
        %v577 = vadd.f32 %v295, %v567
        %v578 = vadd.f32 %v296, %v569
        %579 = vst [vmem:[#allocation2] sm:$0xff] %v571
        %580 = vst [vmem:[#allocation2 + $0x8] sm:$0xff] %v572
        %581 = vst [vmem:[#allocation2 + $0x10] sm:$0xff] %v573
        %582 = vst [vmem:[#allocation2 + $0x18] sm:$0xff] %v574
        %583 = vst [vmem:[#allocation2 + $0x20] sm:$0xff] %v575
        %584 = vst [vmem:[#allocation2 + $0x28] sm:$0xff] %v576
        %585 = vst [vmem:[#allocation2 + $0x30] sm:$0xff] %v577
        %586 = vst [vmem:[#allocation2 + $0x38] sm:$0xff] %v578
        // Predicated region
        $region60: #{conv_t_conv_forward.2} parent=50 // pred_check
          %p587 = pneg %p277
        $region61: #{conv_t_conv_forward.2} parent=50 // pred_check_branch
          %589 = sbr.rel (%p587) target = $region63
        $region62: #{conv_t_conv_forward.2} parent=50 // pred_region
          %v590 = vld [vmem:[#allocation2] sm:$0xff]
          %v591 = vld [vmem:[#allocation2 + $0x8] sm:$0xff]
          %v592 = vld [vmem:[#allocation2 + $0x10] sm:$0xff]
          %v593 = vld [vmem:[#allocation2 + $0x18] sm:$0xff]
          %v594 = vld [vmem:[#allocation2 + $0x20] sm:$0xff]
          %v595 = vld [vmem:[#allocation2 + $0x28] sm:$0xff]
          %v596 = vld [vmem:[#allocation2 + $0x30] sm:$0xff]
          %v597 = vld [vmem:[#allocation2 + $0x38] sm:$0xff]
          %v598 = vld [vmem:[%s2] sm:$0xff]
          %v599 = vld [vmem:[%s2 + $0x8] sm:$0xff]
          %601 = vset.pattern.permute.xlu0 0
          %602 = vperm.xlu0 %601, %v598
          %v603 = vpop.permute.xlu0 %602
          %606 = vset.pattern.permute.xlu0 0
          %607 = vperm.xlu0 %606, %v599
          %v608 = vpop.permute.xlu0 %607
          %v610 = vadd.f32 %v590, %v603
          %v611 = vadd.f32 %v591, %v603
          %v612 = vadd.f32 %v592, %v603
          %v613 = vadd.f32 %v593, %v603
          %v614 = vadd.f32 %v594, %v608
          %v615 = vadd.f32 %v595, %v608
          %v616 = vadd.f32 %v596, %v608
          %v617 = vadd.f32 %v597, %v608
          %v618 = vmax.f32 %v610, 0.0
          %v619 = vmax.f32 %v611, 0.0
          %v620 = vmax.f32 %v612, 0.0
          %v621 = vmax.f32 %v613, 0.0
          %v622 = vmax.f32 %v614, 0.0
          %v623 = vmax.f32 %v615, 0.0
          %v624 = vmax.f32 %v616, 0.0
          %v625 = vmax.f32 %v617, 0.0
          %v626 = vpack.c.bf16 %v622, %v618
          %v627 = vpack.c.bf16 %v623, %v619
          %v628 = vpack.c.bf16 %v624, %v620
          %v629 = vpack.c.bf16 %v625, %v621
          %v634 = vunpack.c.l.b16 %v626
          %v635 = vunpack.c.l.b16 %v627
          %v636 = vunpack.c.l.b16 %v628
          %v637 = vunpack.c.l.b16 %v629
          %v638 = vunpack.c.h.b16 %v626
          %v639 = vunpack.c.h.b16 %v627
          %v640 = vunpack.c.h.b16 %v628
          %v641 = vunpack.c.h.b16 %v629
          %v642 = vpack.c.b16 %v635, %v634
          %v643 = vpack.c.b16 %v637, %v636
          %v644 = vpack.c.b16 %v639, %v638
          %v645 = vpack.c.b16 %v641, %v640
          %650 = vst [vmem:[%s268] sm:$0xff] %v642
          %651 = vst [vmem:[%s268 + $0x8] sm:$0xff] %v643
          %652 = vst [vmem:[%s268 + $0x10] sm:$0xff] %v644
          %653 = vst [vmem:[%s268 + $0x18] sm:$0xff] %v645
        $region63: #{conv_t_conv_forward.2} parent=50 // pred_fallthru
          _
        %s654 = sand.u32 %s109, 1
        %s655 = sand.u32 %s109, 1
        %s656 = smul.addr %s655, 32
        %s657 = scalar_lea.vmem [#allocation4], %s656
        // Predicated region
        $region64: #{conv_t_conv_forward.2} parent=50 // pred_check
          %p658 = pneg %p119
        $region65: #{conv_t_conv_forward.2} parent=50 // pred_check_branch
          %660 = sbr.rel (%p658) target = $region67
        $region66: #{conv_t_conv_forward.2} parent=50 // pred_region
          %s661 = smul.u32 4, %s18
          %s662 = smul.addr %s661, 4
          %s663 = scalar_lea.vmem %s3, %s662
          // Predicated region
          $region68: #{conv_t_conv_forward.2} parent=66 // pred_check
            _
          $region69: #{conv_t_conv_forward.2} parent=66 // pred_check_branch
            %665 = sbr.rel (0) target = $region71
          $region70: #{conv_t_conv_forward.2} parent=66 // pred_region
            // Predicated region
            $region72: #{conv_t_conv_forward.2} parent=70 // pred_check
              _
            $region73: #{conv_t_conv_forward.2} parent=70 // pred_check_branch
              %667 = sbr.rel (0) target = $region75
            $region74: #{conv_t_conv_forward.2} parent=70 // pred_region
              loop: start=0, step=1, limit=1
              $region76: #{conv_t_conv_forward.2} parent=74 // loop_pre_header
                _
              $region77: #{conv_t_conv_forward.2} parent=74 // loop_header
                %s669 = sphi 0, %s673
                %p670 = scmp.ge.s32.totalorder %s669, 1
                %s674 = sphi %s657, %s657
                %s675 = sphi %s663, %s663
              $region78: #{conv_t_conv_forward.2} parent=74 // loop_header_branch
                %672 = sbr.rel (%p670) target = $region82
              $region79: #{conv_t_conv_forward.2} parent=74 // loop_body
                %v676 = vld [vmem:[%s674] sm:$0xff]
                %677 = vst [vmem:[%s675] sm:$0xff] %v676
                %v678 = vld [vmem:[%s674 + $0x8] sm:$0xff]
                %679 = vst [vmem:[%s675 + $0x8] sm:$0xff] %v678
                %v680 = vld [vmem:[%s674 + $0x10] sm:$0xff]
                %681 = vst [vmem:[%s675 + $0x20] sm:$0xff] %v680
                %v682 = vld [vmem:[%s674 + $0x18] sm:$0xff]
                %683 = vst [vmem:[%s675 + $0x28] sm:$0xff] %v682
              $region80: #{conv_t_conv_forward.2} parent=74 // loop_footer
                %s673 = sadd.s32 1, %s669
              $region81: #{conv_t_conv_forward.2} parent=74 // loop_footer_branch
                %668 = sbr.rel target = $region77
              $region82: #{conv_t_conv_forward.2} parent=74 // loop_exit
                _
            $region75: #{conv_t_conv_forward.2} parent=70 // pred_fallthru
              _
            // Predicated region
            $region83: #{conv_t_conv_forward.2} parent=70 // pred_check
              _
            $region84: #{conv_t_conv_forward.2} parent=70 // pred_check_branch
              %685 = sbr.rel target = $region86
            $region85: #{conv_t_conv_forward.2} parent=70 // pred_region
              _
            $region86: #{conv_t_conv_forward.2} parent=70 // pred_fallthru
              _
          $region71: #{conv_t_conv_forward.2} parent=66 // pred_fallthru
            _
          %686 = vnop
        $region67: #{conv_t_conv_forward.2} parent=50 // pred_fallthru
          _
      $region51: #{conv_t_conv_forward.2} parent=5 // pred_fallthru
        _
      %p687 = scmp.le.s32.totalorder 2, %s9
      // Predicated region
      $region87: #{conv_t_conv_forward.2} parent=5 // pred_check
        %p688 = pneg %p687
      $region88: #{conv_t_conv_forward.2} parent=5 // pred_check_branch
        %690 = sbr.rel (%p688) target = $region90
      $region89: #{conv_t_conv_forward.2} parent=5 // pred_region
        %s691 = ssub.s32 %s9, 2
        // Predicated region
        $region91: #{conv_t_conv_forward.2} parent=89 // pred_check
          %p692 = pneg %p125
        $region92: #{conv_t_conv_forward.2} parent=89 // pred_check_branch
          %694 = sbr.rel (%p692) target = $region94
        $region93: #{conv_t_conv_forward.2} parent=89 // pred_region
          %s695 = sand.u32 %s110, 1
          %s696 = sand.u32 %s110, 1
          %s697 = smul.addr %s696, 32
          %s698 = scalar_lea.vmem [#allocation4], %s697
        $region94: #{conv_t_conv_forward.2} parent=89 // pred_fallthru
          _
      $region90: #{conv_t_conv_forward.2} parent=5 // pred_fallthru
        _
    $region6: #{conv_t_conv_forward.2} parent=1 // loop_footer
      %s13 = sadd.s32 1, %s9
    $region7: #{conv_t_conv_forward.2} parent=1 // loop_footer_branch
      %8 = sbr.rel target = $region3
    $region8: #{conv_t_conv_forward.2} parent=1 // loop_exit
      _

// kernel: conv_t_conv_forward.3
$region0: #{conv_t_conv_forward.3}
  #allocation0 [shape = 'u32[]', space=smem, size = 0x4, offset = 0x4, fixed_abs, tag = 'smem constant byte address 0x4 - core index']
  #allocation1 [shape = 'u32[144,128]{1,0:T(1,128)}', space=vmem, size = 0x12000, scoped, tag = 'internal scratch']
  #allocation2 [shape = 'f32[64,512]{1,0:T(8,128)}', space=vmem, size = 0x20000, scoped, tag = 'scratch operand']
  %s0 = inlined_call_operand.vmem [shape: bf16[64,432], index: 0, kind: input, shape index: {}]
  %s1 = inlined_call_operand.vmem [shape: bf16[432,1024], index: 1, kind: input, shape index: {}]
  %s2 = inlined_call_operand.vmem [shape: f32[64,1], index: 2, kind: input, shape index: {}]
  %s3 = inlined_call_operand.vmem [shape: f32[64,1024], index: 3, kind: output, shape index: {}]
  %s4 = sld [smem:[#allocation0]]
  $region95: #{conv_t_conv_forward.3} parent=0
    _
  %s6 = ssub.s32 1, %s4
  %s7 = scalar_select 0, %s6, %s4
  $region1: #{conv_t_conv_forward.3} parent=0
    #allocation3 [shape = 'u8[884736]{0}', space=vmem, size = 0xd8000, scoped, tag = 'input window, operand 1']
    #allocation4 [shape = 'u8[262144]{0}', space=vmem, size = 0x40000, scoped, tag = 'output window, operand 0']
    loop: start=0, step=1, limit=4
    $region2: #{conv_t_conv_forward.3} parent=1 // loop_pre_header
      _
    $region3: #{conv_t_conv_forward.3} parent=1 // loop_header
      %s9 = sphi 0, %s13
      %p10 = scmp.ge.s32.totalorder %s9, 4
      %s16 = sphi 0, %s28
      %s17 = sphi 0, %s24
      %s18 = sphi 0, %s16
      %s19 = sphi 0, %s17
      %s20 = sphi 0, %s18
      %s21 = sphi 0, %s19
      %s31 = sphi 0, %s33
      %s34 = sphi 0, %s31
      %s35 = sphi 0, %s34
      %s51 = sphi 0, %s35
      %s59 = sphi 0, %s61
      %s62 = sphi 0, %s59
      %s63 = sphi 0, %s62
      %s79 = sphi 0, %s63
      %s83 = sphi 0, %s83
      %s85 = sphi 0, %s83
      %s86 = sphi 0, %s85
      %s100 = sphi 0, %s86
      %s106 = sphi 0, %s108
      %s109 = sphi 0, %s106
      %s110 = sphi 0, %s109
      %s126 = sphi 0, %s110
    $region4: #{conv_t_conv_forward.3} parent=1 // loop_header_branch
      %12 = sbr.rel (%p10) target = $region8
    $region5: #{conv_t_conv_forward.3} parent=1 // loop_body
      %s14 = ssub.s32 %s9, 1
      %s15 = ssub.s32 %s9, 2
      %s22 = sadd.s32 1, %s17
      %p23 = scmp.ge.s32.totalorder %s22, 1
      %s24 = scalar_select %p23, 0, %s22
      %s25 = sadd.s32 1, %s16
      %s26 = scalar_select %p23, %s25, %s16
      %p27 = scmp.ge.s32.totalorder %s26, 2
      %s28 = scalar_select %p27, 0, %s26
      %s29 = ssub.s32 %s17, %s24
      %p30 = scmp.eq.s32.totalorder %s29, 0
      %s32 = sadd.s32 %s31, 1
      %s33 = scalar_select %p30, %s31, %s32
      %p36 = pneg %p30
      %p37 = scmp.eq.s32.totalorder %s9, 1
      %p38 = por %p36, %p37
      %p39 = scmp.ne.s32.totalorder %s31, %s34
      %p40 = scmp.eq.s32.totalorder %s9, 0
      %p41 = por %p39, %p40
      %p42 = scmp.ne.s32.totalorder %s31, %s34
      %p43 = scmp.eq.s32.totalorder %s14, 1
      %p44 = por %p42, %p43
      %p45 = scmp.ne.s32.totalorder %s34, %s35
      %p46 = scmp.eq.s32.totalorder %s14, 0
      %p47 = por %p45, %p46
      %p48 = scmp.ne.s32.totalorder %s34, %s35
      %p49 = scmp.eq.s32.totalorder %s15, 1
      %p50 = por %p48, %p49
      %p52 = scmp.ne.s32.totalorder %s35, %s51
      %p53 = scmp.eq.s32.totalorder %s15, 0
      %p54 = por %p52, %p53
      %s55 = ssub.s32 %s17, %s24
      %s56 = ssub.s32 %s16, %s28
      %s57 = sor.u32 %s55, %s56
      %p58 = scmp.eq.s32.totalorder %s57, 0
      %s60 = sadd.s32 %s59, 1
      %s61 = scalar_select %p58, %s59, %s60
      %p64 = pneg %p58
      %p65 = scmp.eq.s32.totalorder %s9, 1
      %p66 = por %p64, %p65
      %p67 = scmp.ne.s32.totalorder %s59, %s62
      %p68 = scmp.eq.s32.totalorder %s9, 0
      %p69 = por %p67, %p68
      %p70 = scmp.ne.s32.totalorder %s59, %s62
      %p71 = scmp.eq.s32.totalorder %s14, 1
      %p72 = por %p70, %p71
      %p73 = scmp.ne.s32.totalorder %s62, %s63
      %p74 = scmp.eq.s32.totalorder %s14, 0
      %p75 = por %p73, %p74
      %p76 = scmp.ne.s32.totalorder %s62, %s63
      %p77 = scmp.eq.s32.totalorder %s15, 1
      %p78 = por %p76, %p77
      %p80 = scmp.ne.s32.totalorder %s63, %s79
      %p81 = scmp.eq.s32.totalorder %s15, 0
      %p82 = por %p80, %p81
      %s84 = sadd.s32 %s83, 1
      %p87 = scmp.eq.s32.totalorder %s9, 1
      %p88 = scmp.ne.s32.totalorder %s83, %s85
      %p89 = scmp.eq.s32.totalorder %s9, 0
      %p90 = por %p88, %p89
      %p91 = scmp.ne.s32.totalorder %s83, %s85
      %p92 = scmp.eq.s32.totalorder %s14, 1
      %p93 = por %p91, %p92
      %p94 = scmp.ne.s32.totalorder %s85, %s86
      %p95 = scmp.eq.s32.totalorder %s14, 0
      %p96 = por %p94, %p95
      %p97 = scmp.ne.s32.totalorder %s85, %s86
      %p98 = scmp.eq.s32.totalorder %s15, 1
      %p99 = por %p97, %p98
      %p101 = scmp.ne.s32.totalorder %s86, %s100
      %p102 = scmp.eq.s32.totalorder %s15, 0
      %p103 = por %p101, %p102
      %s104 = ssub.s32 %s16, %s28
      %p105 = scmp.eq.s32.totalorder %s104, 0
      %s107 = sadd.s32 %s106, 1
      %s108 = scalar_select %p105, %s106, %s107
      %p111 = pneg %p105
      %p112 = scmp.eq.s32.totalorder %s9, 1
      %p113 = por %p111, %p112
      %p114 = scmp.ne.s32.totalorder %s106, %s109
      %p115 = scmp.eq.s32.totalorder %s9, 0
      %p116 = por %p114, %p115
      %p117 = scmp.ne.s32.totalorder %s106, %s109
      %p118 = scmp.eq.s32.totalorder %s14, 1
      %p119 = por %p117, %p118
      %p120 = scmp.ne.s32.totalorder %s109, %s110
      %p121 = scmp.eq.s32.totalorder %s14, 0
      %p122 = por %p120, %p121
      %p123 = scmp.ne.s32.totalorder %s109, %s110
      %p124 = scmp.eq.s32.totalorder %s15, 1
      %p125 = por %p123, %p124
      %p127 = scmp.ne.s32.totalorder %s110, %s126
      %p128 = scmp.eq.s32.totalorder %s15, 0
      %p129 = por %p127, %p128
      %p130 = scmp.le.s32.totalorder 1, %s9
      %p131 = scmp.lt.s32.totalorder %s9, 3
      %p132 = pnand %p130, %p131
      %p133 = pneg %p132
      // Predicated region
      $region9: #{conv_t_conv_forward.3} parent=5 // pred_check
        _
      $region10: #{conv_t_conv_forward.3} parent=5 // pred_check_branch
        %135 = sbr.rel (%p132) target = $region12
      $region11: #{conv_t_conv_forward.3} parent=5 // pred_region
        %s136 = ssub.s32 %s9, 1
        // Predicated region
        $region13: #{conv_t_conv_forward.3} parent=11 // pred_check
          %p137 = pneg %p47
        $region14: #{conv_t_conv_forward.3} parent=11 // pred_check_branch
          %139 = sbr.rel (%p137) target = $region16
        $region15: #{conv_t_conv_forward.3} parent=11 // pred_region
          %s140 = smul.u32 4, %s19
          %p141 = scmp.lt.s32.totalorder %s140, 3
          %s142 = scalar_select %p141, %s140, 3
          %s143 = smul.addr %s142, 4
          %s144 = scalar_lea.vmem %s0, %s143
          %s145 = smul.u32 4, %s19
        $region16: #{conv_t_conv_forward.3} parent=11 // pred_fallthru
          _
        // Predicated region
        $region17: #{conv_t_conv_forward.3} parent=11 // pred_check
          %p146 = pneg %p96
        $region18: #{conv_t_conv_forward.3} parent=11 // pred_check_branch
          %148 = sbr.rel (%p146) target = $region20
        $region19: #{conv_t_conv_forward.3} parent=11 // pred_region
          _
        $region20: #{conv_t_conv_forward.3} parent=11 // pred_fallthru
          _
      $region12: #{conv_t_conv_forward.3} parent=5 // pred_fallthru
        _
      %p149 = scmp.lt.s32.totalorder %s9, 2
      // Predicated region
      $region21: #{conv_t_conv_forward.3} parent=5 // pred_check
        %p150 = pneg %p149
      $region22: #{conv_t_conv_forward.3} parent=5 // pred_check_branch
        %152 = sbr.rel (%p150) target = $region24
      $region23: #{conv_t_conv_forward.3} parent=5 // pred_region
        // Predicated region
        $region25: #{conv_t_conv_forward.3} parent=23 // pred_check
          %p153 = pneg %p69
        $region26: #{conv_t_conv_forward.3} parent=23 // pred_check_branch
          %155 = sbr.rel (%p153) target = $region28
        $region27: #{conv_t_conv_forward.3} parent=23 // pred_region
          %s156 = sand.u32 %s59, 1
          %s157 = sand.u32 %s59, 1
          %s158 = smul.addr %s157, 864
          %s159 = scalar_lea.vmem [#allocation3], %s158
          %s160 = smul.u32 54, %s17
          %s161 = smul.u32 4, %s16
          %s162 = smul.addr %s160, 8
          %s163 = sadd.s32 %s161, %s162
          %s164 = smul.addr %s163, 4
          %s165 = scalar_lea.vmem %s1, %s164
          // Predicated region
          $region29: #{conv_t_conv_forward.3} parent=27 // pred_check
            _
          $region30: #{conv_t_conv_forward.3} parent=27 // pred_check_branch
            %167 = sbr.rel (0) target = $region32
          $region31: #{conv_t_conv_forward.3} parent=27 // pred_region
            // Predicated region
            $region33: #{conv_t_conv_forward.3} parent=31 // pred_check
              _
            $region34: #{conv_t_conv_forward.3} parent=31 // pred_check_branch
              %169 = sbr.rel (0) target = $region36
            $region35: #{conv_t_conv_forward.3} parent=31 // pred_region
              loop: start=0, step=1, limit=1
              $region37: #{conv_t_conv_forward.3} parent=35 // loop_pre_header
                _
              $region38: #{conv_t_conv_forward.3} parent=35 // loop_header
                %s171 = sphi 0, %s175
                %p172 = scmp.ge.s32.totalorder %s171, 1
                %s176 = sphi %s165, %s165
                %s177 = sphi %s159, %s159
              $region39: #{conv_t_conv_forward.3} parent=35 // loop_header_branch
                %174 = sbr.rel (%p172) target = $region43
              $region40: #{conv_t_conv_forward.3} parent=35 // loop_body
                %v178 = vld [vmem:[%s176] sm:$0xff]
                %179 = vst [vmem:[%s177] sm:$0xff] %v178
                %v180 = vld [vmem:[%s176 + $0x8] sm:$0xff]
                %181 = vst [vmem:[%s177 + $0x8] sm:$0xff] %v180
                %v182 = vld [vmem:[%s176 + $0x20] sm:$0xff]
                %183 = vst [vmem:[%s177 + $0x10] sm:$0xff] %v182
                %v184 = vld [vmem:[%s176 + $0x28] sm:$0xff]
                %185 = vst [vmem:[%s177 + $0x18] sm:$0xff] %v184
                %v186 = vld [vmem:[%s176 + $0x40] sm:$0xff]
                %187 = vst [vmem:[%s177 + $0x20] sm:$0xff] %v186
                %v188 = vld [vmem:[%s176 + $0x48] sm:$0xff]
                %189 = vst [vmem:[%s177 + $0x28] sm:$0xff] %v188
                %v190 = vld [vmem:[%s176 + $0x60] sm:$0xff]
                %191 = vst [vmem:[%s177 + $0x30] sm:$0xff] %v190
                %v192 = vld [vmem:[%s176 + $0x68] sm:$0xff]
                %193 = vst [vmem:[%s177 + $0x38] sm:$0xff] %v192
                %v194 = vld [vmem:[%s176 + $0x80] sm:$0xff]
                %195 = vst [vmem:[%s177 + $0x40] sm:$0xff] %v194
                %v196 = vld [vmem:[%s176 + $0x88] sm:$0xff]
                %197 = vst [vmem:[%s177 + $0x48] sm:$0xff] %v196
                %v198 = vld [vmem:[%s176 + $0xa0] sm:$0xff]
                %199 = vst [vmem:[%s177 + $0x50] sm:$0xff] %v198
                %v200 = vld [vmem:[%s176 + $0xa8] sm:$0xff]
                %201 = vst [vmem:[%s177 + $0x58] sm:$0xff] %v200
                %v202 = vld [vmem:[%s176 + $0xc0] sm:$0xff]
                %203 = vst [vmem:[%s177 + $0x60] sm:$0xff] %v202
                %v204 = vld [vmem:[%s176 + $0xc8] sm:$0xff]
                %205 = vst [vmem:[%s177 + $0x68] sm:$0xff] %v204
                %v206 = vld [vmem:[%s176 + $0xe0] sm:$0xff]
                %207 = vst [vmem:[%s177 + $0x70] sm:$0xff] %v206
                %v208 = vld [vmem:[%s176 + $0xe8] sm:$0xff]
                %209 = vst [vmem:[%s177 + $0x78] sm:$0xff] %v208
                %v210 = vld [vmem:[%s176 + $0x100] sm:$0xff]
                %211 = vst [vmem:[%s177 + $0x80] sm:$0xff] %v210
                %v212 = vld [vmem:[%s176 + $0x108] sm:$0xff]
                %213 = vst [vmem:[%s177 + $0x88] sm:$0xff] %v212
                %v214 = vld [vmem:[%s176 + $0x120] sm:$0xff]
                %215 = vst [vmem:[%s177 + $0x90] sm:$0xff] %v214
                %v216 = vld [vmem:[%s176 + $0x128] sm:$0xff]
                %217 = vst [vmem:[%s177 + $0x98] sm:$0xff] %v216
                %v218 = vld [vmem:[%s176 + $0x140] sm:$0xff]
                %219 = vst [vmem:[%s177 + $0xa0] sm:$0xff] %v218
                %v220 = vld [vmem:[%s176 + $0x148] sm:$0xff]
                %221 = vst [vmem:[%s177 + $0xa8] sm:$0xff] %v220
                %v222 = vld [vmem:[%s176 + $0x160] sm:$0xff]
                %223 = vst [vmem:[%s177 + $0xb0] sm:$0xff] %v222
                %v224 = vld [vmem:[%s176 + $0x168] sm:$0xff]
                %225 = vst [vmem:[%s177 + $0xb8] sm:$0xff] %v224
                %v226 = vld [vmem:[%s176 + $0x180] sm:$0xff]
                %227 = vst [vmem:[%s177 + $0xc0] sm:$0xff] %v226
                %v228 = vld [vmem:[%s176 + $0x188] sm:$0xff]
                %229 = vst [vmem:[%s177 + $0xc8] sm:$0xff] %v228
                %v230 = vld [vmem:[%s176 + $0x1a0] sm:$0xff]
                %231 = vst [vmem:[%s177 + $0xd0] sm:$0xff] %v230
                %v232 = vld [vmem:[%s176 + $0x1a8] sm:$0xff]
                %233 = vst [vmem:[%s177 + $0xd8] sm:$0xff] %v232
                %v234 = vld [vmem:[%s176 + $0x1c0] sm:$0xff]
                %235 = vst [vmem:[%s177 + $0xe0] sm:$0xff] %v234
                %v236 = vld [vmem:[%s176 + $0x1c8] sm:$0xff]
                %237 = vst [vmem:[%s177 + $0xe8] sm:$0xff] %v236
                %v238 = vld [vmem:[%s176 + $0x1e0] sm:$0xff]
                %239 = vst [vmem:[%s177 + $0xf0] sm:$0xff] %v238
                %v240 = vld [vmem:[%s176 + $0x1e8] sm:$0xff]
                %241 = vst [vmem:[%s177 + $0xf8] sm:$0xff] %v240
                %v242 = vld [vmem:[%s176 + $0x200] sm:$0xff]
                %243 = vst [vmem:[%s177 + $0x100] sm:$0xff] %v242
                %v244 = vld [vmem:[%s176 + $0x208] sm:$0xff]
                %245 = vst [vmem:[%s177 + $0x108] sm:$0xff] %v244
                %v246 = vld [vmem:[%s176 + $0x220] sm:$0xff]
                %247 = vst [vmem:[%s177 + $0x110] sm:$0xff] %v246
                %v248 = vld [vmem:[%s176 + $0x228] sm:$0xff]
                %249 = vst [vmem:[%s177 + $0x118] sm:$0xff] %v248
                %v250 = vld [vmem:[%s176 + $0x240] sm:$0xff]
                %251 = vst [vmem:[%s177 + $0x120] sm:$0xff] %v250
                %v252 = vld [vmem:[%s176 + $0x248] sm:$0xff]
                %253 = vst [vmem:[%s177 + $0x128] sm:$0xff] %v252
                %v254 = vld [vmem:[%s176 + $0x260] sm:$0xff]
                %255 = vst [vmem:[%s177 + $0x130] sm:$0xff] %v254
                %v256 = vld [vmem:[%s176 + $0x268] sm:$0xff]
                %257 = vst [vmem:[%s177 + $0x138] sm:$0xff] %v256
                %v258 = vld [vmem:[%s176 + $0x280] sm:$0xff]
                %259 = vst [vmem:[%s177 + $0x140] sm:$0xff] %v258
                %v260 = vld [vmem:[%s176 + $0x288] sm:$0xff]
                %261 = vst [vmem:[%s177 + $0x148] sm:$0xff] %v260
                %v262 = vld [vmem:[%s176 + $0x2a0] sm:$0xff]
                %263 = vst [vmem:[%s177 + $0x150] sm:$0xff] %v262
                %v264 = vld [vmem:[%s176 + $0x2a8] sm:$0xff]
                %265 = vst [vmem:[%s177 + $0x158] sm:$0xff] %v264
                %v266 = vld [vmem:[%s176 + $0x2c0] sm:$0xff]
                %267 = vst [vmem:[%s177 + $0x160] sm:$0xff] %v266
                %v268 = vld [vmem:[%s176 + $0x2c8] sm:$0xff]
                %269 = vst [vmem:[%s177 + $0x168] sm:$0xff] %v268
                %v270 = vld [vmem:[%s176 + $0x2e0] sm:$0xff]
                %271 = vst [vmem:[%s177 + $0x170] sm:$0xff] %v270
                %v272 = vld [vmem:[%s176 + $0x2e8] sm:$0xff]
                %273 = vst [vmem:[%s177 + $0x178] sm:$0xff] %v272
                %v274 = vld [vmem:[%s176 + $0x300] sm:$0xff]
                %275 = vst [vmem:[%s177 + $0x180] sm:$0xff] %v274
                %v276 = vld [vmem:[%s176 + $0x308] sm:$0xff]
                %277 = vst [vmem:[%s177 + $0x188] sm:$0xff] %v276
                %v278 = vld [vmem:[%s176 + $0x320] sm:$0xff]
                %279 = vst [vmem:[%s177 + $0x190] sm:$0xff] %v278
                %v280 = vld [vmem:[%s176 + $0x328] sm:$0xff]
                %281 = vst [vmem:[%s177 + $0x198] sm:$0xff] %v280
                %v282 = vld [vmem:[%s176 + $0x340] sm:$0xff]
                %283 = vst [vmem:[%s177 + $0x1a0] sm:$0xff] %v282
                %v284 = vld [vmem:[%s176 + $0x348] sm:$0xff]
                %285 = vst [vmem:[%s177 + $0x1a8] sm:$0xff] %v284
                %v286 = vld [vmem:[%s176 + $0x360] sm:$0xff]
                %287 = vst [vmem:[%s177 + $0x1b0] sm:$0xff] %v286
                %v288 = vld [vmem:[%s176 + $0x368] sm:$0xff]
                %289 = vst [vmem:[%s177 + $0x1b8] sm:$0xff] %v288
                %v290 = vld [vmem:[%s176 + $0x380] sm:$0xff]
                %291 = vst [vmem:[%s177 + $0x1c0] sm:$0xff] %v290
                %v292 = vld [vmem:[%s176 + $0x388] sm:$0xff]
                %293 = vst [vmem:[%s177 + $0x1c8] sm:$0xff] %v292
                %v294 = vld [vmem:[%s176 + $0x3a0] sm:$0xff]
                %295 = vst [vmem:[%s177 + $0x1d0] sm:$0xff] %v294
                %v296 = vld [vmem:[%s176 + $0x3a8] sm:$0xff]
                %297 = vst [vmem:[%s177 + $0x1d8] sm:$0xff] %v296
                %v298 = vld [vmem:[%s176 + $0x3c0] sm:$0xff]
                %299 = vst [vmem:[%s177 + $0x1e0] sm:$0xff] %v298
                %v300 = vld [vmem:[%s176 + $0x3c8] sm:$0xff]
                %301 = vst [vmem:[%s177 + $0x1e8] sm:$0xff] %v300
                %v302 = vld [vmem:[%s176 + $0x3e0] sm:$0xff]
                %303 = vst [vmem:[%s177 + $0x1f0] sm:$0xff] %v302
                %v304 = vld [vmem:[%s176 + $0x3e8] sm:$0xff]
                %305 = vst [vmem:[%s177 + $0x1f8] sm:$0xff] %v304
                %v306 = vld [vmem:[%s176 + $0x400] sm:$0xff]
                %307 = vst [vmem:[%s177 + $0x200] sm:$0xff] %v306
                %v308 = vld [vmem:[%s176 + $0x408] sm:$0xff]
                %309 = vst [vmem:[%s177 + $0x208] sm:$0xff] %v308
                %v310 = vld [vmem:[%s176 + $0x420] sm:$0xff]
                %311 = vst [vmem:[%s177 + $0x210] sm:$0xff] %v310
                %v312 = vld [vmem:[%s176 + $0x428] sm:$0xff]
                %313 = vst [vmem:[%s177 + $0x218] sm:$0xff] %v312
                %v314 = vld [vmem:[%s176 + $0x440] sm:$0xff]
                %315 = vst [vmem:[%s177 + $0x220] sm:$0xff] %v314
                %v316 = vld [vmem:[%s176 + $0x448] sm:$0xff]
                %317 = vst [vmem:[%s177 + $0x228] sm:$0xff] %v316
                %v318 = vld [vmem:[%s176 + $0x460] sm:$0xff]
                %319 = vst [vmem:[%s177 + $0x230] sm:$0xff] %v318
                %v320 = vld [vmem:[%s176 + $0x468] sm:$0xff]
                %321 = vst [vmem:[%s177 + $0x238] sm:$0xff] %v320
                %v322 = vld [vmem:[%s176 + $0x480] sm:$0xff]
                %323 = vst [vmem:[%s177 + $0x240] sm:$0xff] %v322
                %v324 = vld [vmem:[%s176 + $0x488] sm:$0xff]
                %325 = vst [vmem:[%s177 + $0x248] sm:$0xff] %v324
                %v326 = vld [vmem:[%s176 + $0x4a0] sm:$0xff]
                %327 = vst [vmem:[%s177 + $0x250] sm:$0xff] %v326
                %v328 = vld [vmem:[%s176 + $0x4a8] sm:$0xff]
                %329 = vst [vmem:[%s177 + $0x258] sm:$0xff] %v328
                %v330 = vld [vmem:[%s176 + $0x4c0] sm:$0xff]
                %331 = vst [vmem:[%s177 + $0x260] sm:$0xff] %v330
                %v332 = vld [vmem:[%s176 + $0x4c8] sm:$0xff]
                %333 = vst [vmem:[%s177 + $0x268] sm:$0xff] %v332
                %v334 = vld [vmem:[%s176 + $0x4e0] sm:$0xff]
                %335 = vst [vmem:[%s177 + $0x270] sm:$0xff] %v334
                %v336 = vld [vmem:[%s176 + $0x4e8] sm:$0xff]
                %337 = vst [vmem:[%s177 + $0x278] sm:$0xff] %v336
                %v338 = vld [vmem:[%s176 + $0x500] sm:$0xff]
                %339 = vst [vmem:[%s177 + $0x280] sm:$0xff] %v338
                %v340 = vld [vmem:[%s176 + $0x508] sm:$0xff]
                %341 = vst [vmem:[%s177 + $0x288] sm:$0xff] %v340
                %v342 = vld [vmem:[%s176 + $0x520] sm:$0xff]
                %343 = vst [vmem:[%s177 + $0x290] sm:$0xff] %v342
                %v344 = vld [vmem:[%s176 + $0x528] sm:$0xff]
                %345 = vst [vmem:[%s177 + $0x298] sm:$0xff] %v344
                %v346 = vld [vmem:[%s176 + $0x540] sm:$0xff]
                %347 = vst [vmem:[%s177 + $0x2a0] sm:$0xff] %v346
                %v348 = vld [vmem:[%s176 + $0x548] sm:$0xff]
                %349 = vst [vmem:[%s177 + $0x2a8] sm:$0xff] %v348
                %v350 = vld [vmem:[%s176 + $0x560] sm:$0xff]
                %351 = vst [vmem:[%s177 + $0x2b0] sm:$0xff] %v350
                %v352 = vld [vmem:[%s176 + $0x568] sm:$0xff]
                %353 = vst [vmem:[%s177 + $0x2b8] sm:$0xff] %v352
                %v354 = vld [vmem:[%s176 + $0x580] sm:$0xff]
                %355 = vst [vmem:[%s177 + $0x2c0] sm:$0xff] %v354
                %v356 = vld [vmem:[%s176 + $0x588] sm:$0xff]
                %357 = vst [vmem:[%s177 + $0x2c8] sm:$0xff] %v356
                %v358 = vld [vmem:[%s176 + $0x5a0] sm:$0xff]
                %359 = vst [vmem:[%s177 + $0x2d0] sm:$0xff] %v358
                %v360 = vld [vmem:[%s176 + $0x5a8] sm:$0xff]
                %361 = vst [vmem:[%s177 + $0x2d8] sm:$0xff] %v360
                %v362 = vld [vmem:[%s176 + $0x5c0] sm:$0xff]
                %363 = vst [vmem:[%s177 + $0x2e0] sm:$0xff] %v362
                %v364 = vld [vmem:[%s176 + $0x5c8] sm:$0xff]
                %365 = vst [vmem:[%s177 + $0x2e8] sm:$0xff] %v364
                %v366 = vld [vmem:[%s176 + $0x5e0] sm:$0xff]
                %367 = vst [vmem:[%s177 + $0x2f0] sm:$0xff] %v366
                %v368 = vld [vmem:[%s176 + $0x5e8] sm:$0xff]
                %369 = vst [vmem:[%s177 + $0x2f8] sm:$0xff] %v368
                %v370 = vld [vmem:[%s176 + $0x600] sm:$0xff]
                %371 = vst [vmem:[%s177 + $0x300] sm:$0xff] %v370
                %v372 = vld [vmem:[%s176 + $0x608] sm:$0xff]
                %373 = vst [vmem:[%s177 + $0x308] sm:$0xff] %v372
                %v374 = vld [vmem:[%s176 + $0x620] sm:$0xff]
                %375 = vst [vmem:[%s177 + $0x310] sm:$0xff] %v374
                %v376 = vld [vmem:[%s176 + $0x628] sm:$0xff]
                %377 = vst [vmem:[%s177 + $0x318] sm:$0xff] %v376
                %v378 = vld [vmem:[%s176 + $0x640] sm:$0xff]
                %379 = vst [vmem:[%s177 + $0x320] sm:$0xff] %v378
                %v380 = vld [vmem:[%s176 + $0x648] sm:$0xff]
                %381 = vst [vmem:[%s177 + $0x328] sm:$0xff] %v380
                %v382 = vld [vmem:[%s176 + $0x660] sm:$0xff]
                %383 = vst [vmem:[%s177 + $0x330] sm:$0xff] %v382
                %v384 = vld [vmem:[%s176 + $0x668] sm:$0xff]
                %385 = vst [vmem:[%s177 + $0x338] sm:$0xff] %v384
                %v386 = vld [vmem:[%s176 + $0x680] sm:$0xff]
                %387 = vst [vmem:[%s177 + $0x340] sm:$0xff] %v386
                %v388 = vld [vmem:[%s176 + $0x688] sm:$0xff]
                %389 = vst [vmem:[%s177 + $0x348] sm:$0xff] %v388
                %v390 = vld [vmem:[%s176 + $0x6a0] sm:$0xff]
                %391 = vst [vmem:[%s177 + $0x350] sm:$0xff] %v390
                %v392 = vld [vmem:[%s176 + $0x6a8] sm:$0xff]
                %393 = vst [vmem:[%s177 + $0x358] sm:$0xff] %v392
              $region41: #{conv_t_conv_forward.3} parent=35 // loop_footer
                %s175 = sadd.s32 1, %s171
              $region42: #{conv_t_conv_forward.3} parent=35 // loop_footer_branch
                %170 = sbr.rel target = $region38
              $region43: #{conv_t_conv_forward.3} parent=35 // loop_exit
                _
            $region36: #{conv_t_conv_forward.3} parent=31 // pred_fallthru
              _
            // Predicated region
            $region44: #{conv_t_conv_forward.3} parent=31 // pred_check
              _
            $region45: #{conv_t_conv_forward.3} parent=31 // pred_check_branch
              %395 = sbr.rel target = $region47
            $region46: #{conv_t_conv_forward.3} parent=31 // pred_region
              _
            $region47: #{conv_t_conv_forward.3} parent=31 // pred_fallthru
              _
          $region32: #{conv_t_conv_forward.3} parent=27 // pred_fallthru
            _
          %396 = vnop
        $region28: #{conv_t_conv_forward.3} parent=23 // pred_fallthru
          _
      $region24: #{conv_t_conv_forward.3} parent=5 // pred_fallthru
        _
      %p397 = scmp.le.s32.totalorder 1, %s9
      %p398 = scmp.lt.s32.totalorder %s9, 3
      %p399 = pnand %p397, %p398
      %p400 = pneg %p399
      // Predicated region
      $region48: #{conv_t_conv_forward.3} parent=5 // pred_check
        _
      $region49: #{conv_t_conv_forward.3} parent=5 // pred_check_branch
        %402 = sbr.rel (%p399) target = $region51
      $region50: #{conv_t_conv_forward.3} parent=5 // pred_region
        %s403 = ssub.s32 %s9, 1
        %s404 = sand.u32 %s62, 1
        %s405 = sand.u32 %s62, 1
        %s406 = smul.addr %s405, 864
        %s407 = scalar_lea.vmem [#allocation3], %s406
        // Predicated region
        $region52: #{conv_t_conv_forward.3} parent=50 // pred_check
          %p408 = pneg %p75
        $region53: #{conv_t_conv_forward.3} parent=50 // pred_check_branch
          %410 = sbr.rel (%p408) target = $region55
        $region54: #{conv_t_conv_forward.3} parent=50 // pred_region
          _
        $region55: #{conv_t_conv_forward.3} parent=50 // pred_fallthru
          _
        %s411 = smul.u32 4, %s19
        %p412 = scmp.lt.s32.totalorder %s411, 3
        %s413 = scalar_select %p412, %s411, 3
        %s414 = smul.addr %s413, 4
        %s415 = scalar_lea.vmem %s0, %s414
        %p416 = pneg %p47
        %p417 = pneg %p44
        %s418 = sand.u32 %s62, 1
        %s419 = sand.u32 %s62, 1
        %s420 = smul.addr %s419, 864
        %s421 = scalar_lea.vmem [#allocation3], %s420
        %p422 = pneg %p75
        %p423 = pneg %p72
        %p424 = pneg %p96
        %p425 = pneg %p93
        %p426 = pneg %p122
        %p427 = pneg %p119
        %s428 = sand.u32 %s109, 1
        %s429 = sand.u32 %s109, 1
        %s430 = smul.addr %s429, 256
        %s431 = scalar_lea.vmem [#allocation4], %s430
        %s432 = smul.u32 4, %s19
        %p433 = scmp.lt.s32.totalorder %s432, 3
        %s434 = scalar_select %p433, %s432, 3
        %s435 = smul.addr %s434, 4
        %s436 = scalar_lea.vmem %s0, %s435
        %s437 = smul.u32 4, %s19
        %s438 = smul.u32 54, %s19
        %s439 = smul.u32 4, %s18
        %s440 = smul.u32 4, %s18
        %p442 = scmp.eq.s32.totalorder %s19, 0
        // Predicated region
        $region56: #{conv_t_conv_forward.3} parent=50 // pred_check
          %p443 = pneg %p442
        $region57: #{conv_t_conv_forward.3} parent=50 // pred_check_branch
          %445 = sbr.rel (%p443) target = $region59
        $region58: #{conv_t_conv_forward.3} parent=50 // pred_region
          %446 = vst [vmem:[#allocation2] sm:$0xff] 0.0
          %447 = vst [vmem:[#allocation2 + $0x8] sm:$0xff] 0.0
          %448 = vst [vmem:[#allocation2 + $0x10] sm:$0xff] 0.0
          %449 = vst [vmem:[#allocation2 + $0x18] sm:$0xff] 0.0
          %450 = vst [vmem:[#allocation2 + $0x20] sm:$0xff] 0.0
          %451 = vst [vmem:[#allocation2 + $0x28] sm:$0xff] 0.0
          %452 = vst [vmem:[#allocation2 + $0x30] sm:$0xff] 0.0
          %453 = vst [vmem:[#allocation2 + $0x38] sm:$0xff] 0.0
          %454 = vst [vmem:[#allocation2 + $0x40] sm:$0xff] 0.0
          %455 = vst [vmem:[#allocation2 + $0x48] sm:$0xff] 0.0
          %456 = vst [vmem:[#allocation2 + $0x50] sm:$0xff] 0.0
          %457 = vst [vmem:[#allocation2 + $0x58] sm:$0xff] 0.0
          %458 = vst [vmem:[#allocation2 + $0x60] sm:$0xff] 0.0
          %459 = vst [vmem:[#allocation2 + $0x68] sm:$0xff] 0.0
          %460 = vst [vmem:[#allocation2 + $0x70] sm:$0xff] 0.0
          %461 = vst [vmem:[#allocation2 + $0x78] sm:$0xff] 0.0
          %462 = vst [vmem:[#allocation2 + $0x80] sm:$0xff] 0.0
          %463 = vst [vmem:[#allocation2 + $0x88] sm:$0xff] 0.0
          %464 = vst [vmem:[#allocation2 + $0x90] sm:$0xff] 0.0
          %465 = vst [vmem:[#allocation2 + $0x98] sm:$0xff] 0.0
          %466 = vst [vmem:[#allocation2 + $0xa0] sm:$0xff] 0.0
          %467 = vst [vmem:[#allocation2 + $0xa8] sm:$0xff] 0.0
          %468 = vst [vmem:[#allocation2 + $0xb0] sm:$0xff] 0.0
          %469 = vst [vmem:[#allocation2 + $0xb8] sm:$0xff] 0.0
          %470 = vst [vmem:[#allocation2 + $0xc0] sm:$0xff] 0.0
          %471 = vst [vmem:[#allocation2 + $0xc8] sm:$0xff] 0.0
          %472 = vst [vmem:[#allocation2 + $0xd0] sm:$0xff] 0.0
          %473 = vst [vmem:[#allocation2 + $0xd8] sm:$0xff] 0.0
          %474 = vst [vmem:[#allocation2 + $0xe0] sm:$0xff] 0.0
          %475 = vst [vmem:[#allocation2 + $0xe8] sm:$0xff] 0.0
          %476 = vst [vmem:[#allocation2 + $0xf0] sm:$0xff] 0.0
          %477 = vst [vmem:[#allocation2 + $0xf8] sm:$0xff] 0.0
        $region59: #{conv_t_conv_forward.3} parent=50 // pred_fallthru
          _
        %v478 = vld [vmem:[#allocation2] sm:$0xff]
        %v479 = vld [vmem:[#allocation2 + $0x8] sm:$0xff]
        %v480 = vld [vmem:[#allocation2 + $0x10] sm:$0xff]
        %v481 = vld [vmem:[#allocation2 + $0x18] sm:$0xff]
        %v482 = vld [vmem:[#allocation2 + $0x20] sm:$0xff]
        %v483 = vld [vmem:[#allocation2 + $0x28] sm:$0xff]
        %v484 = vld [vmem:[#allocation2 + $0x30] sm:$0xff]
        %v485 = vld [vmem:[#allocation2 + $0x38] sm:$0xff]
        %v486 = vld [vmem:[#allocation2 + $0x40] sm:$0xff]
        %v487 = vld [vmem:[#allocation2 + $0x48] sm:$0xff]
        %v488 = vld [vmem:[#allocation2 + $0x50] sm:$0xff]
        %v489 = vld [vmem:[#allocation2 + $0x58] sm:$0xff]
        %v490 = vld [vmem:[#allocation2 + $0x60] sm:$0xff]
        %v491 = vld [vmem:[#allocation2 + $0x68] sm:$0xff]
        %v492 = vld [vmem:[#allocation2 + $0x70] sm:$0xff]
        %v493 = vld [vmem:[#allocation2 + $0x78] sm:$0xff]
        %v494 = vld [vmem:[#allocation2 + $0x80] sm:$0xff]
        %v495 = vld [vmem:[#allocation2 + $0x88] sm:$0xff]
        %v496 = vld [vmem:[#allocation2 + $0x90] sm:$0xff]
        %v497 = vld [vmem:[#allocation2 + $0x98] sm:$0xff]
        %v498 = vld [vmem:[#allocation2 + $0xa0] sm:$0xff]
        %v499 = vld [vmem:[#allocation2 + $0xa8] sm:$0xff]
        %v500 = vld [vmem:[#allocation2 + $0xb0] sm:$0xff]
        %v501 = vld [vmem:[#allocation2 + $0xb8] sm:$0xff]
        %v502 = vld [vmem:[#allocation2 + $0xc0] sm:$0xff]
        %v503 = vld [vmem:[#allocation2 + $0xc8] sm:$0xff]
        %v504 = vld [vmem:[#allocation2 + $0xd0] sm:$0xff]
        %v505 = vld [vmem:[#allocation2 + $0xd8] sm:$0xff]
        %v506 = vld [vmem:[#allocation2 + $0xe0] sm:$0xff]
        %v507 = vld [vmem:[#allocation2 + $0xe8] sm:$0xff]
        %v508 = vld [vmem:[#allocation2 + $0xf0] sm:$0xff]
        %v509 = vld [vmem:[#allocation2 + $0xf8] sm:$0xff]
        %v510 = vld [vmem:[%s436] sm:$0xff]
        %v511 = vld [vmem:[%s436 + $0x8] sm:$0xff]
        %v512 = vld [vmem:[%s436 + $0x10] sm:$0xff]
        %v513 = vld [vmem:[%s436 + $0x18] sm:$0xff]
        %v514 = vld [vmem:[%s436 + $0x20] sm:$0xff]
        %v515 = vld [vmem:[%s436 + $0x28] sm:$0xff]
        %v516 = vld [vmem:[%s436 + $0x30] sm:$0xff]
        %v517 = vld [vmem:[%s436 + $0x38] sm:$0xff]
        %v518 = vld [vmem:[%s436 + $0x40] sm:$0xff]
        %v519 = vld [vmem:[%s436 + $0x48] sm:$0xff]
        %v520 = vld [vmem:[%s436 + $0x50] sm:$0xff]
        %v521 = vld [vmem:[%s436 + $0x58] sm:$0xff]
        %v522 = vld [vmem:[%s436 + $0x60] sm:$0xff]
        %v523 = vld [vmem:[%s436 + $0x68] sm:$0xff]
        %v524 = vld [vmem:[%s436 + $0x70] sm:$0xff]
        %v525 = vld [vmem:[%s436 + $0x78] sm:$0xff]
        %v526 = vld [vmem:[%s407] sm:$0xff]
        %v527 = vld [vmem:[%s407 + $0x8] sm:$0xff]
        %v528 = vld [vmem:[%s407 + $0x10] sm:$0xff]
        %v529 = vld [vmem:[%s407 + $0x18] sm:$0xff]
        %v530 = vld [vmem:[%s407 + $0x20] sm:$0xff]
        %v531 = vld [vmem:[%s407 + $0x28] sm:$0xff]
        %v532 = vld [vmem:[%s407 + $0x30] sm:$0xff]
        %v533 = vld [vmem:[%s407 + $0x38] sm:$0xff]
        %v534 = vld [vmem:[%s407 + $0x40] sm:$0xff]
        %v535 = vld [vmem:[%s407 + $0x48] sm:$0xff]
        %v536 = vld [vmem:[%s407 + $0x50] sm:$0xff]
        %v537 = vld [vmem:[%s407 + $0x58] sm:$0xff]
        %v538 = vld [vmem:[%s407 + $0x60] sm:$0xff]
        %v539 = vld [vmem:[%s407 + $0x68] sm:$0xff]
        %v540 = vld [vmem:[%s407 + $0x70] sm:$0xff]
        %v541 = vld [vmem:[%s407 + $0x78] sm:$0xff]
        %v542 = vld [vmem:[%s407 + $0x80] sm:$0xff]
        %v543 = vld [vmem:[%s407 + $0x88] sm:$0xff]
        %v544 = vld [vmem:[%s407 + $0x90] sm:$0xff]
        %v545 = vld [vmem:[%s407 + $0x98] sm:$0xff]
        %v546 = vld [vmem:[%s407 + $0xa0] sm:$0xff]
        %v547 = vld [vmem:[%s407 + $0xa8] sm:$0xff]
        %v548 = vld [vmem:[%s407 + $0xb0] sm:$0xff]
        %v549 = vld [vmem:[%s407 + $0xb8] sm:$0xff]
        %v550 = vld [vmem:[%s407 + $0xc0] sm:$0xff]
        %v551 = vld [vmem:[%s407 + $0xc8] sm:$0xff]
        %v552 = vld [vmem:[%s407 + $0xd0] sm:$0xff]
        %v553 = vld [vmem:[%s407 + $0xd8] sm:$0xff]
        %v554 = vld [vmem:[%s407 + $0xe0] sm:$0xff]
        %v555 = vld [vmem:[%s407 + $0xe8] sm:$0xff]
        %v556 = vld [vmem:[%s407 + $0xf0] sm:$0xff]
        %v557 = vld [vmem:[%s407 + $0xf8] sm:$0xff]
        %v558 = vld [vmem:[%s407 + $0x100] sm:$0xff]
        %v559 = vld [vmem:[%s407 + $0x108] sm:$0xff]
        %v560 = vld [vmem:[%s407 + $0x110] sm:$0xff]
        %v561 = vld [vmem:[%s407 + $0x118] sm:$0xff]
        %v562 = vld [vmem:[%s407 + $0x120] sm:$0xff]
        %v563 = vld [vmem:[%s407 + $0x128] sm:$0xff]
        %v564 = vld [vmem:[%s407 + $0x130] sm:$0xff]
        %v565 = vld [vmem:[%s407 + $0x138] sm:$0xff]
        %v566 = vld [vmem:[%s407 + $0x140] sm:$0xff]
        %v567 = vld [vmem:[%s407 + $0x148] sm:$0xff]
        %v568 = vld [vmem:[%s407 + $0x150] sm:$0xff]
        %v569 = vld [vmem:[%s407 + $0x158] sm:$0xff]
        %v570 = vld [vmem:[%s407 + $0x160] sm:$0xff]
        %v571 = vld [vmem:[%s407 + $0x168] sm:$0xff]
        %v572 = vld [vmem:[%s407 + $0x170] sm:$0xff]
        %v573 = vld [vmem:[%s407 + $0x178] sm:$0xff]
        %v574 = vld [vmem:[%s407 + $0x180] sm:$0xff]
        %v575 = vld [vmem:[%s407 + $0x188] sm:$0xff]
        %v576 = vld [vmem:[%s407 + $0x190] sm:$0xff]
        %v577 = vld [vmem:[%s407 + $0x198] sm:$0xff]
        %v578 = vld [vmem:[%s407 + $0x1a0] sm:$0xff]
        %v579 = vld [vmem:[%s407 + $0x1a8] sm:$0xff]
        %v580 = vld [vmem:[%s407 + $0x1b0] sm:$0xff]
        %v581 = vld [vmem:[%s407 + $0x1b8] sm:$0xff]
        %v582 = vld [vmem:[%s407 + $0x1c0] sm:$0xff]
        %v583 = vld [vmem:[%s407 + $0x1c8] sm:$0xff]
        %v584 = vld [vmem:[%s407 + $0x1d0] sm:$0xff]
        %v585 = vld [vmem:[%s407 + $0x1d8] sm:$0xff]
        %v586 = vld [vmem:[%s407 + $0x1e0] sm:$0xff]
        %v587 = vld [vmem:[%s407 + $0x1e8] sm:$0xff]
        %v588 = vld [vmem:[%s407 + $0x1f0] sm:$0xff]
        %v589 = vld [vmem:[%s407 + $0x1f8] sm:$0xff]
        %v590 = vld [vmem:[%s407 + $0x200] sm:$0xff]
        %v591 = vld [vmem:[%s407 + $0x208] sm:$0xff]
        %v592 = vld [vmem:[%s407 + $0x210] sm:$0xff]
        %v593 = vld [vmem:[%s407 + $0x218] sm:$0xff]
        %v594 = vld [vmem:[%s407 + $0x220] sm:$0xff]
        %v595 = vld [vmem:[%s407 + $0x228] sm:$0xff]
        %v596 = vld [vmem:[%s407 + $0x230] sm:$0xff]
        %v597 = vld [vmem:[%s407 + $0x238] sm:$0xff]
        %v598 = vld [vmem:[%s407 + $0x240] sm:$0xff]
        %v599 = vld [vmem:[%s407 + $0x248] sm:$0xff]
        %v600 = vld [vmem:[%s407 + $0x250] sm:$0xff]
        %v601 = vld [vmem:[%s407 + $0x258] sm:$0xff]
        %v602 = vld [vmem:[%s407 + $0x260] sm:$0xff]
        %v603 = vld [vmem:[%s407 + $0x268] sm:$0xff]
        %v604 = vld [vmem:[%s407 + $0x270] sm:$0xff]
        %v605 = vld [vmem:[%s407 + $0x278] sm:$0xff]
        %v606 = vld [vmem:[%s407 + $0x280] sm:$0xff]
        %v607 = vld [vmem:[%s407 + $0x288] sm:$0xff]
        %v608 = vld [vmem:[%s407 + $0x290] sm:$0xff]
        %v609 = vld [vmem:[%s407 + $0x298] sm:$0xff]
        %v610 = vld [vmem:[%s407 + $0x2a0] sm:$0xff]
        %v611 = vld [vmem:[%s407 + $0x2a8] sm:$0xff]
        %v612 = vld [vmem:[%s407 + $0x2b0] sm:$0xff]
        %v613 = vld [vmem:[%s407 + $0x2b8] sm:$0xff]
        %v614 = vld [vmem:[%s407 + $0x2c0] sm:$0xff]
        %v615 = vld [vmem:[%s407 + $0x2c8] sm:$0xff]
        %v616 = vld [vmem:[%s407 + $0x2d0] sm:$0xff]
        %v617 = vld [vmem:[%s407 + $0x2d8] sm:$0xff]
        %v618 = vld [vmem:[%s407 + $0x2e0] sm:$0xff]
        %v619 = vld [vmem:[%s407 + $0x2e8] sm:$0xff]
        %v620 = vld [vmem:[%s407 + $0x2f0] sm:$0xff]
        %v621 = vld [vmem:[%s407 + $0x2f8] sm:$0xff]
        %v622 = vld [vmem:[%s407 + $0x300] sm:$0xff]
        %v623 = vld [vmem:[%s407 + $0x308] sm:$0xff]
        %v624 = vld [vmem:[%s407 + $0x310] sm:$0xff]
        %v625 = vld [vmem:[%s407 + $0x318] sm:$0xff]
        %v626 = vld [vmem:[%s407 + $0x320] sm:$0xff]
        %v627 = vld [vmem:[%s407 + $0x328] sm:$0xff]
        %v628 = vld [vmem:[%s407 + $0x330] sm:$0xff]
        %v629 = vld [vmem:[%s407 + $0x338] sm:$0xff]
        %v630 = vld [vmem:[%s407 + $0x340] sm:$0xff]
        %v631 = vld [vmem:[%s407 + $0x348] sm:$0xff]
        %v632 = vld [vmem:[%s407 + $0x350] sm:$0xff]
        %v633 = vld [vmem:[%s407 + $0x358] sm:$0xff]
        %v650 = vunpack.c.l.b16 %v510
        %v651 = vunpack.c.h.b16 %v510
        %v652 = vunpack.c.l.b16 %v511
        %v653 = vunpack.c.h.b16 %v511
        %v654 = vunpack.c.l.b16 %v512
        %v655 = vunpack.c.h.b16 %v512
        %v656 = vunpack.c.l.b16 %v513
        %v657 = vunpack.c.h.b16 %v513
        %v658 = vunpack.c.l.b16 %v514
        %v659 = vunpack.c.h.b16 %v514
        %v660 = vunpack.c.l.b16 %v515
        %v661 = vunpack.c.h.b16 %v515
        %v662 = vunpack.c.l.b16 %v516
        %v663 = vunpack.c.h.b16 %v516
        %v664 = vunpack.c.l.b16 %v517
        %v665 = vunpack.c.h.b16 %v517
        %v666 = vunpack.c.l.b16 %v518
        %v667 = vunpack.c.h.b16 %v518
        %v668 = vunpack.c.l.b16 %v519
        %v669 = vunpack.c.h.b16 %v519
        %v670 = vunpack.c.l.b16 %v520
        %v671 = vunpack.c.h.b16 %v520
        %v672 = vunpack.c.l.b16 %v521
        %v673 = vunpack.c.h.b16 %v521
        %v674 = vunpack.c.l.b16 %v522
        %v675 = vunpack.c.h.b16 %v522
        %v676 = vunpack.c.l.b16 %v523
        %v677 = vunpack.c.h.b16 %v523
        %v678 = vunpack.c.l.b16 %v524
        %v679 = vunpack.c.h.b16 %v524
        %v680 = vunpack.c.l.b16 %v525
        %v681 = vunpack.c.h.b16 %v525
        %v682 = vpack.c.b16 %v654, %v650
        %v683 = vpack.c.b16 %v655, %v651
        %v684 = vpack.c.b16 %v656, %v652
        %v685 = vpack.c.b16 %v657, %v653
        %v686 = vpack.c.b16 %v662, %v658
        %v687 = vpack.c.b16 %v663, %v659
        %v688 = vpack.c.b16 %v664, %v660
        %v689 = vpack.c.b16 %v665, %v661
        %v690 = vpack.c.b16 %v670, %v666
        %v691 = vpack.c.b16 %v671, %v667
        %v692 = vpack.c.b16 %v672, %v668
        %v693 = vpack.c.b16 %v673, %v669
        %v694 = vpack.c.b16 %v678, %v674
        %v695 = vpack.c.b16 %v679, %v675
        %v696 = vpack.c.b16 %v680, %v676
        %v697 = vpack.c.b16 %v681, %v677
        %v818 = vunpack.c.l.b16 %v526
        %v819 = vunpack.c.h.b16 %v526
        %v820 = vunpack.c.l.b16 %v527
        %v821 = vunpack.c.h.b16 %v527
        %v822 = vunpack.c.l.b16 %v528
        %v823 = vunpack.c.h.b16 %v528
        %v824 = vunpack.c.l.b16 %v529
        %v825 = vunpack.c.h.b16 %v529
        %v826 = vunpack.c.l.b16 %v530
        %v827 = vunpack.c.h.b16 %v530
        %v828 = vunpack.c.l.b16 %v531
        %v829 = vunpack.c.h.b16 %v531
        %v830 = vunpack.c.l.b16 %v532
        %v831 = vunpack.c.h.b16 %v532
        %v832 = vunpack.c.l.b16 %v533
        %v833 = vunpack.c.h.b16 %v533
        %v834 = vunpack.c.l.b16 %v534
        %v835 = vunpack.c.h.b16 %v534
        %v836 = vunpack.c.l.b16 %v535
        %v837 = vunpack.c.h.b16 %v535
        %v838 = vunpack.c.l.b16 %v536
        %v839 = vunpack.c.h.b16 %v536
        %v840 = vunpack.c.l.b16 %v537
        %v841 = vunpack.c.h.b16 %v537
        %v842 = vunpack.c.l.b16 %v538
        %v843 = vunpack.c.h.b16 %v538
        %v844 = vunpack.c.l.b16 %v539
        %v845 = vunpack.c.h.b16 %v539
        %v846 = vunpack.c.l.b16 %v540
        %v847 = vunpack.c.h.b16 %v540
        %v848 = vunpack.c.l.b16 %v541
        %v849 = vunpack.c.h.b16 %v541
        %v850 = vunpack.c.l.b16 %v542
        %v851 = vunpack.c.h.b16 %v542
        %v852 = vunpack.c.l.b16 %v543
        %v853 = vunpack.c.h.b16 %v543
        %v854 = vunpack.c.l.b16 %v544
        %v855 = vunpack.c.h.b16 %v544
        %v856 = vunpack.c.l.b16 %v545
        %v857 = vunpack.c.h.b16 %v545
        %v858 = vunpack.c.l.b16 %v546
        %v859 = vunpack.c.h.b16 %v546
        %v860 = vunpack.c.l.b16 %v547
        %v861 = vunpack.c.h.b16 %v547
        %v862 = vunpack.c.l.b16 %v548
        %v863 = vunpack.c.h.b16 %v548
        %v864 = vunpack.c.l.b16 %v549
        %v865 = vunpack.c.h.b16 %v549
        %v866 = vunpack.c.l.b16 %v550
        %v867 = vunpack.c.h.b16 %v550
        %v868 = vunpack.c.l.b16 %v551
        %v869 = vunpack.c.h.b16 %v551
        %v870 = vunpack.c.l.b16 %v552
        %v871 = vunpack.c.h.b16 %v552
        %v872 = vunpack.c.l.b16 %v553
        %v873 = vunpack.c.h.b16 %v553
        %v874 = vunpack.c.l.b16 %v554
        %v875 = vunpack.c.h.b16 %v554
        %v876 = vunpack.c.l.b16 %v555
        %v877 = vunpack.c.h.b16 %v555
        %v878 = vunpack.c.l.b16 %v556
        %v879 = vunpack.c.h.b16 %v556
        %v880 = vunpack.c.l.b16 %v557
        %v881 = vunpack.c.h.b16 %v557
        %v882 = vunpack.c.l.b16 %v558
        %v883 = vunpack.c.h.b16 %v558
        %v884 = vunpack.c.l.b16 %v559
        %v885 = vunpack.c.h.b16 %v559
        %v886 = vunpack.c.l.b16 %v560
        %v887 = vunpack.c.h.b16 %v560
        %v888 = vunpack.c.l.b16 %v561
        %v889 = vunpack.c.h.b16 %v561
        %v890 = vunpack.c.l.b16 %v562
        %v891 = vunpack.c.h.b16 %v562
        %v892 = vunpack.c.l.b16 %v563
        %v893 = vunpack.c.h.b16 %v563
        %v894 = vunpack.c.l.b16 %v564
        %v895 = vunpack.c.h.b16 %v564
        %v896 = vunpack.c.l.b16 %v565
        %v897 = vunpack.c.h.b16 %v565
        %v898 = vunpack.c.l.b16 %v566
        %v899 = vunpack.c.h.b16 %v566
        %v900 = vunpack.c.l.b16 %v567
        %v901 = vunpack.c.h.b16 %v567
        %v902 = vunpack.c.l.b16 %v568
        %v903 = vunpack.c.h.b16 %v568
        %v904 = vunpack.c.l.b16 %v569
        %v905 = vunpack.c.h.b16 %v569
        %v906 = vunpack.c.l.b16 %v570
        %v907 = vunpack.c.h.b16 %v570
        %v908 = vunpack.c.l.b16 %v571
        %v909 = vunpack.c.h.b16 %v571
        %v910 = vunpack.c.l.b16 %v572
        %v911 = vunpack.c.h.b16 %v572
        %v912 = vunpack.c.l.b16 %v573
        %v913 = vunpack.c.h.b16 %v573
        %v914 = vunpack.c.l.b16 %v574
        %v915 = vunpack.c.h.b16 %v574
        %v916 = vunpack.c.l.b16 %v575
        %v917 = vunpack.c.h.b16 %v575
        %v918 = vunpack.c.l.b16 %v576
        %v919 = vunpack.c.h.b16 %v576
        %v920 = vunpack.c.l.b16 %v577
        %v921 = vunpack.c.h.b16 %v577
        %v922 = vunpack.c.l.b16 %v578
        %v923 = vunpack.c.h.b16 %v578
        %v924 = vunpack.c.l.b16 %v579
        %v925 = vunpack.c.h.b16 %v579
        %v926 = vunpack.c.l.b16 %v580
        %v927 = vunpack.c.h.b16 %v580
        %v928 = vunpack.c.l.b16 %v581
        %v929 = vunpack.c.h.b16 %v581
        %v930 = vunpack.c.l.b16 %v582
        %v931 = vunpack.c.h.b16 %v582
        %v932 = vunpack.c.l.b16 %v583
        %v933 = vunpack.c.h.b16 %v583
        %v934 = vunpack.c.l.b16 %v584
        %v935 = vunpack.c.h.b16 %v584
        %v936 = vunpack.c.l.b16 %v585
        %v937 = vunpack.c.h.b16 %v585
        %v938 = vunpack.c.l.b16 %v586
        %v939 = vunpack.c.h.b16 %v586
        %v940 = vunpack.c.l.b16 %v587
        %v941 = vunpack.c.h.b16 %v587
        %v942 = vunpack.c.l.b16 %v588
        %v943 = vunpack.c.h.b16 %v588
        %v944 = vunpack.c.l.b16 %v589
        %v945 = vunpack.c.h.b16 %v589
        %v946 = vunpack.c.l.b16 %v590
        %v947 = vunpack.c.h.b16 %v590
        %v948 = vunpack.c.l.b16 %v591
        %v949 = vunpack.c.h.b16 %v591
        %v950 = vunpack.c.l.b16 %v592
        %v951 = vunpack.c.h.b16 %v592
        %v952 = vunpack.c.l.b16 %v593
        %v953 = vunpack.c.h.b16 %v593
        %v954 = vunpack.c.l.b16 %v594
        %v955 = vunpack.c.h.b16 %v594
        %v956 = vunpack.c.l.b16 %v595
        %v957 = vunpack.c.h.b16 %v595
        %v958 = vunpack.c.l.b16 %v596
        %v959 = vunpack.c.h.b16 %v596
        %v960 = vunpack.c.l.b16 %v597
        %v961 = vunpack.c.h.b16 %v597
        %v962 = vunpack.c.l.b16 %v598
        %v963 = vunpack.c.h.b16 %v598
        %v964 = vunpack.c.l.b16 %v599
        %v965 = vunpack.c.h.b16 %v599
        %v966 = vunpack.c.l.b16 %v600
        %v967 = vunpack.c.h.b16 %v600
        %v968 = vunpack.c.l.b16 %v601
        %v969 = vunpack.c.h.b16 %v601
        %v970 = vunpack.c.l.b16 %v602
        %v971 = vunpack.c.h.b16 %v602
        %v972 = vunpack.c.l.b16 %v603
        %v973 = vunpack.c.h.b16 %v603
        %v974 = vunpack.c.l.b16 %v604
        %v975 = vunpack.c.h.b16 %v604
        %v976 = vunpack.c.l.b16 %v605
        %v977 = vunpack.c.h.b16 %v605
        %v978 = vunpack.c.l.b16 %v606
        %v979 = vunpack.c.h.b16 %v606
        %v980 = vunpack.c.l.b16 %v607
        %v981 = vunpack.c.h.b16 %v607
        %v982 = vunpack.c.l.b16 %v608
        %v983 = vunpack.c.h.b16 %v608
        %v984 = vunpack.c.l.b16 %v609
        %v985 = vunpack.c.h.b16 %v609
        %v986 = vunpack.c.l.b16 %v610
        %v987 = vunpack.c.h.b16 %v610
        %v988 = vunpack.c.l.b16 %v611
        %v989 = vunpack.c.h.b16 %v611
        %v990 = vunpack.c.l.b16 %v612
        %v991 = vunpack.c.h.b16 %v612
        %v992 = vunpack.c.l.b16 %v613
        %v993 = vunpack.c.h.b16 %v613
        %v994 = vunpack.c.l.b16 %v614
        %v995 = vunpack.c.h.b16 %v614
        %v996 = vunpack.c.l.b16 %v615
        %v997 = vunpack.c.h.b16 %v615
        %v998 = vunpack.c.l.b16 %v616
        %v999 = vunpack.c.h.b16 %v616
        %v1000 = vunpack.c.l.b16 %v617
        %v1001 = vunpack.c.h.b16 %v617
        %v1002 = vunpack.c.l.b16 %v618
        %v1003 = vunpack.c.h.b16 %v618
        %v1004 = vunpack.c.l.b16 %v619
        %v1005 = vunpack.c.h.b16 %v619
        %v1006 = vunpack.c.l.b16 %v620
        %v1007 = vunpack.c.h.b16 %v620
        %v1008 = vunpack.c.l.b16 %v621
        %v1009 = vunpack.c.h.b16 %v621
        %v1010 = vunpack.c.l.b16 %v622
        %v1011 = vunpack.c.h.b16 %v622
        %v1012 = vunpack.c.l.b16 %v623
        %v1013 = vunpack.c.h.b16 %v623
        %v1014 = vunpack.c.l.b16 %v624
        %v1015 = vunpack.c.h.b16 %v624
        %v1016 = vunpack.c.l.b16 %v625
        %v1017 = vunpack.c.h.b16 %v625
        %v1018 = vunpack.c.l.b16 %v626
        %v1019 = vunpack.c.h.b16 %v626
        %v1020 = vunpack.c.l.b16 %v627
        %v1021 = vunpack.c.h.b16 %v627
        %v1022 = vunpack.c.l.b16 %v628
        %v1023 = vunpack.c.h.b16 %v628
        %v1024 = vunpack.c.l.b16 %v629
        %v1025 = vunpack.c.h.b16 %v629
        %v1026 = vunpack.c.l.b16 %v630
        %v1027 = vunpack.c.h.b16 %v630
        %v1028 = vunpack.c.l.b16 %v631
        %v1029 = vunpack.c.h.b16 %v631
        %v1030 = vunpack.c.l.b16 %v632
        %v1031 = vunpack.c.h.b16 %v632
        %v1032 = vunpack.c.l.b16 %v633
        %v1033 = vunpack.c.h.b16 %v633
        %v1034 = vpack.c.b16 %v822, %v818
        %v1035 = vpack.c.b16 %v823, %v819
        %v1036 = vpack.c.b16 %v824, %v820
        %v1037 = vpack.c.b16 %v825, %v821
        %v1038 = vpack.c.b16 %v830, %v826
        %v1039 = vpack.c.b16 %v831, %v827
        %v1040 = vpack.c.b16 %v832, %v828
        %v1041 = vpack.c.b16 %v833, %v829
        %v1042 = vpack.c.b16 %v838, %v834
        %v1043 = vpack.c.b16 %v839, %v835
        %v1044 = vpack.c.b16 %v840, %v836
        %v1045 = vpack.c.b16 %v841, %v837
        %v1046 = vpack.c.b16 %v846, %v842
        %v1047 = vpack.c.b16 %v847, %v843
        %v1048 = vpack.c.b16 %v848, %v844
        %v1049 = vpack.c.b16 %v849, %v845
        %v1050 = vpack.c.b16 %v854, %v850
        %v1051 = vpack.c.b16 %v855, %v851
        %v1052 = vpack.c.b16 %v856, %v852
        %v1053 = vpack.c.b16 %v857, %v853
        %v1054 = vpack.c.b16 %v862, %v858
        %v1055 = vpack.c.b16 %v863, %v859
        %v1056 = vpack.c.b16 %v864, %v860
        %v1057 = vpack.c.b16 %v865, %v861
        %v1058 = vpack.c.b16 %v870, %v866
        %v1059 = vpack.c.b16 %v871, %v867
        %v1060 = vpack.c.b16 %v872, %v868
        %v1061 = vpack.c.b16 %v873, %v869
        %v1062 = vpack.c.b16 %v878, %v874
        %v1063 = vpack.c.b16 %v879, %v875
        %v1064 = vpack.c.b16 %v880, %v876
        %v1065 = vpack.c.b16 %v881, %v877
        %v1066 = vpack.c.b16 %v886, %v882
        %v1067 = vpack.c.b16 %v887, %v883
        %v1068 = vpack.c.b16 %v888, %v884
        %v1069 = vpack.c.b16 %v889, %v885
        %v1070 = vpack.c.b16 %v894, %v890
        %v1071 = vpack.c.b16 %v895, %v891
        %v1072 = vpack.c.b16 %v896, %v892
        %v1073 = vpack.c.b16 %v897, %v893
        %v1074 = vpack.c.b16 %v902, %v898
        %v1075 = vpack.c.b16 %v903, %v899
        %v1076 = vpack.c.b16 %v904, %v900
        %v1077 = vpack.c.b16 %v905, %v901
        %v1078 = vpack.c.b16 %v910, %v906
        %v1079 = vpack.c.b16 %v911, %v907
        %v1080 = vpack.c.b16 %v912, %v908
        %v1081 = vpack.c.b16 %v913, %v909
        %v1082 = vpack.c.b16 %v918, %v914
        %v1083 = vpack.c.b16 %v919, %v915
        %v1084 = vpack.c.b16 %v920, %v916
        %v1085 = vpack.c.b16 %v921, %v917
        %v1086 = vpack.c.b16 %v926, %v922
        %v1087 = vpack.c.b16 %v927, %v923
        %v1088 = vpack.c.b16 %v928, %v924
        %v1089 = vpack.c.b16 %v929, %v925
        %v1090 = vpack.c.b16 %v934, %v930
        %v1091 = vpack.c.b16 %v935, %v931
        %v1092 = vpack.c.b16 %v936, %v932
        %v1093 = vpack.c.b16 %v937, %v933
        %v1094 = vpack.c.b16 %v942, %v938
        %v1095 = vpack.c.b16 %v943, %v939
        %v1096 = vpack.c.b16 %v944, %v940
        %v1097 = vpack.c.b16 %v945, %v941
        %v1098 = vpack.c.b16 %v950, %v946
        %v1099 = vpack.c.b16 %v951, %v947
        %v1100 = vpack.c.b16 %v952, %v948
        %v1101 = vpack.c.b16 %v953, %v949
        %v1102 = vpack.c.b16 %v958, %v954
        %v1103 = vpack.c.b16 %v959, %v955
        %v1104 = vpack.c.b16 %v960, %v956
        %v1105 = vpack.c.b16 %v961, %v957
        %v1106 = vpack.c.b16 %v966, %v962
        %v1107 = vpack.c.b16 %v967, %v963
        %v1108 = vpack.c.b16 %v968, %v964
        %v1109 = vpack.c.b16 %v969, %v965
        %v1110 = vpack.c.b16 %v974, %v970
        %v1111 = vpack.c.b16 %v975, %v971
        %v1112 = vpack.c.b16 %v976, %v972
        %v1113 = vpack.c.b16 %v977, %v973
        %v1114 = vpack.c.b16 %v982, %v978
        %v1115 = vpack.c.b16 %v983, %v979
        %v1116 = vpack.c.b16 %v984, %v980
        %v1117 = vpack.c.b16 %v985, %v981
        %v1118 = vpack.c.b16 %v990, %v986
        %v1119 = vpack.c.b16 %v991, %v987
        %v1120 = vpack.c.b16 %v992, %v988
        %v1121 = vpack.c.b16 %v993, %v989
        %v1122 = vpack.c.b16 %v998, %v994
        %v1123 = vpack.c.b16 %v999, %v995
        %v1124 = vpack.c.b16 %v1000, %v996
        %v1125 = vpack.c.b16 %v1001, %v997
        %v1126 = vpack.c.b16 %v1006, %v1002
        %v1127 = vpack.c.b16 %v1007, %v1003
        %v1128 = vpack.c.b16 %v1008, %v1004
        %v1129 = vpack.c.b16 %v1009, %v1005
        %v1130 = vpack.c.b16 %v1014, %v1010
        %v1131 = vpack.c.b16 %v1015, %v1011
        %v1132 = vpack.c.b16 %v1016, %v1012
        %v1133 = vpack.c.b16 %v1017, %v1013
        %v1134 = vpack.c.b16 %v1022, %v1018
        %v1135 = vpack.c.b16 %v1023, %v1019
        %v1136 = vpack.c.b16 %v1024, %v1020
        %v1137 = vpack.c.b16 %v1025, %v1021
        %v1138 = vpack.c.b16 %v1030, %v1026
        %v1139 = vpack.c.b16 %v1031, %v1027
        %v1140 = vpack.c.b16 %v1032, %v1028
        %v1141 = vpack.c.b16 %v1033, %v1029
        %vm1250 = vcmask 392192
        %v1252 = vsel %vm1250, %v685, 0
        %v1255 = vsel %vm1250, %v689, 0
        %v1258 = vsel %vm1250, %v693, 0
        %v1261 = vsel %vm1250, %v697, 0
        %1263 = vmatprep.subr.bf16.mxu0 %v1035
        %1264 = vmatpush1.bf16.msra.mxu0 %v1034
        %1265 = vmatprep.subr.bf16.mxu0 %v1039
        %1266 = vmatpush1.bf16.msra.mxu0 %v1038
        %1267 = vmatprep.subr.bf16.mxu0 %v1043
        %1268 = vmatpush1.bf16.msra.mxu0 %v1042
        %1269 = vmatprep.subr.bf16.mxu0 %v1047
        %1270 = vmatpush1.bf16.msra.mxu0 %v1046
        %1271 = vmatprep.subr.bf16.mxu0 %v1051
        %1272 = vmatpush1.bf16.msra.mxu0 %v1050
        %1273 = vmatprep.subr.bf16.mxu0 %v1055
        %1274 = vmatpush1.bf16.msra.mxu0 %v1054
        %1275 = vmatprep.subr.bf16.mxu0 %v1059
        %1276 = vmatpush1.bf16.msra.mxu0 %v1058
        %1277 = vmatprep.subr.bf16.mxu0 %v1063
        %1278 = vmatpush1.bf16.msra.mxu0 %v1062
        %1279 = vmatprep.subr.bf16.mxu0 %v1067
        %1280 = vmatpush1.bf16.msra.mxu0 %v1066
        %1281 = vmatprep.subr.bf16.mxu0 %v1071
        %1282 = vmatpush1.bf16.msra.mxu0 %v1070
        %1283 = vmatprep.subr.bf16.mxu0 %v1075
        %1284 = vmatpush1.bf16.msra.mxu0 %v1074
        %1285 = vmatprep.subr.bf16.mxu0 %v1079
        %1286 = vmatpush1.bf16.msra.mxu0 %v1078
        %1287 = vmatprep.subr.bf16.mxu0 %v1083
        %1288 = vmatpush1.bf16.msra.mxu0 %v1082
        %1289 = vmatprep.subr.bf16.mxu0 %v1087
        %1290 = vmatpush1.bf16.msra.mxu0 %v1086
        %1291 = vmatprep.subr.bf16.mxu0 %v1091
        %1292 = vmatpush1.bf16.msra.mxu0 %v1090
        %1293 = vmatprep.subr.bf16.mxu0 %v1095
        %1294 = vmatpush1.bf16.msra.mxu0 %v1094
        %1295 = vmatprep.mubr.bf16.mxu0 %v683
        %1296 = vmatmul.mubr.bf16.gmra.mrb[0].mxu0 %v682
        %v1297 = vpop.f32.mrb[0].mxu0
        %v1298 = vadd.f32 0.0, %v1297
        %v1299 = vpop.f32.mrb[0].mxu0
        %v1300 = vadd.f32 0.0, %v1299
        %v1301 = vpop.f32.mrb[0].mxu0
        %v1302 = vadd.f32 0.0, %v1301
        %v1303 = vpop.f32.mrb[0].mxu0
        %v1304 = vadd.f32 0.0, %v1303
        %1305 = vmatprep.mubr.bf16.mxu0 %v687
        %1306 = vmatmul.mubr.bf16.gmra.mrb[0].mxu0 %v686
        %v1307 = vpop.f32.mrb[0].mxu0
        %v1308 = vadd.f32 0.0, %v1307
        %v1309 = vpop.f32.mrb[0].mxu0
        %v1310 = vadd.f32 0.0, %v1309
        %v1311 = vpop.f32.mrb[0].mxu0
        %v1312 = vadd.f32 0.0, %v1311
        %v1313 = vpop.f32.mrb[0].mxu0
        %v1314 = vadd.f32 0.0, %v1313
        %1315 = vmatprep.mubr.bf16.mxu0 %v691
        %1316 = vmatmul.mubr.bf16.gmra.mrb[0].mxu0 %v690
        %v1317 = vpop.f32.mrb[0].mxu0
        %v1318 = vadd.f32 0.0, %v1317
        %v1319 = vpop.f32.mrb[0].mxu0
        %v1320 = vadd.f32 0.0, %v1319
        %v1321 = vpop.f32.mrb[0].mxu0
        %v1322 = vadd.f32 0.0, %v1321
        %v1323 = vpop.f32.mrb[0].mxu0
        %v1324 = vadd.f32 0.0, %v1323
        %1325 = vmatprep.mubr.bf16.mxu0 %v695
        %1326 = vmatmul.mubr.bf16.gmra.mrb[0].mxu0 %v694
        %v1327 = vpop.f32.mrb[0].mxu0
        %v1328 = vadd.f32 0.0, %v1327
        %v1329 = vpop.f32.mrb[0].mxu0
        %v1330 = vadd.f32 0.0, %v1329
        %v1331 = vpop.f32.mrb[0].mxu0
        %v1332 = vadd.f32 0.0, %v1331
        %v1333 = vpop.f32.mrb[0].mxu0
        %v1334 = vadd.f32 0.0, %v1333
        %1335 = vdwg.mxu0
        %1336 = vmatprep.subr.bf16.mxu0 %v1099
        %1337 = vmatpush1.bf16.msra.mxu0 %v1098
        %1338 = vmatprep.subr.bf16.mxu0 %v1103
        %1339 = vmatpush1.bf16.msra.mxu0 %v1102
        %1340 = vmatprep.subr.bf16.mxu0 %v1107
        %1341 = vmatpush1.bf16.msra.mxu0 %v1106
        %1342 = vmatprep.subr.bf16.mxu0 %v1111
        %1343 = vmatpush1.bf16.msra.mxu0 %v1110
        %1344 = vmatprep.subr.bf16.mxu0 %v1115
        %1345 = vmatpush1.bf16.msra.mxu0 %v1114
        %1346 = vmatprep.subr.bf16.mxu0 %v1119
        %1347 = vmatpush1.bf16.msra.mxu0 %v1118
        %1348 = vmatprep.subr.bf16.mxu0 %v1123
        %1349 = vmatpush1.bf16.msra.mxu0 %v1122
        %1350 = vmatprep.subr.bf16.mxu0 %v1127
        %1351 = vmatpush1.bf16.msra.mxu0 %v1126
        %1352 = vmatprep.subr.bf16.mxu0 %v1131
        %1353 = vmatpush1.bf16.msra.mxu0 %v1130
        %1354 = vmatprep.subr.bf16.mxu0 %v1135
        %1355 = vmatpush1.bf16.msra.mxu0 %v1134
        %1356 = vmatprep.subr.bf16.mxu0 %v1139
        %1357 = vmatpush1.bf16.msra.mxu0 %v1138
        %1358 = vmatprep.subr.bf16.mxu0 0
        %1359 = vmatpush1.bf16.msra.mxu0 0
        %1360 = vmatprep.subr.bf16.mxu0 0
        %1361 = vmatpush1.bf16.msra.mxu0 0
        %1362 = vmatprep.subr.bf16.mxu0 0
        %1363 = vmatpush1.bf16.msra.mxu0 0
        %1364 = vmatprep.subr.bf16.mxu0 0
        %1365 = vmatpush1.bf16.msra.mxu0 0
        %1366 = vmatprep.subr.bf16.mxu0 0
        %1367 = vmatpush1.bf16.msra.mxu0 0
        %1368 = vmatprep.mubr.bf16.mxu0 %v1252
        %1369 = vmatmul.mubr.bf16.gmra.mrb[0].mxu0 %v684
        %v1370 = vpop.f32.mrb[0].mxu0
        %v1371 = vadd.f32 %v1298, %v1370
        %v1372 = vpop.f32.mrb[0].mxu0
        %v1373 = vadd.f32 %v1300, %v1372
        %v1374 = vpop.f32.mrb[0].mxu0
        %v1375 = vadd.f32 %v1302, %v1374
        %v1376 = vpop.f32.mrb[0].mxu0
        %v1377 = vadd.f32 %v1304, %v1376
        %1378 = vmatprep.mubr.bf16.mxu0 %v1255
        %1379 = vmatmul.mubr.bf16.gmra.mrb[0].mxu0 %v688
        %v1380 = vpop.f32.mrb[0].mxu0
        %v1381 = vadd.f32 %v1308, %v1380
        %v1382 = vpop.f32.mrb[0].mxu0
        %v1383 = vadd.f32 %v1310, %v1382
        %v1384 = vpop.f32.mrb[0].mxu0
        %v1385 = vadd.f32 %v1312, %v1384
        %v1386 = vpop.f32.mrb[0].mxu0
        %v1387 = vadd.f32 %v1314, %v1386
        %1388 = vmatprep.mubr.bf16.mxu0 %v1258
        %1389 = vmatmul.mubr.bf16.gmra.mrb[0].mxu0 %v692
        %v1390 = vpop.f32.mrb[0].mxu0
        %v1391 = vadd.f32 %v1318, %v1390
        %v1392 = vpop.f32.mrb[0].mxu0
        %v1393 = vadd.f32 %v1320, %v1392
        %v1394 = vpop.f32.mrb[0].mxu0
        %v1395 = vadd.f32 %v1322, %v1394
        %v1396 = vpop.f32.mrb[0].mxu0
        %v1397 = vadd.f32 %v1324, %v1396
        %1398 = vmatprep.mubr.bf16.mxu0 %v1261
        %1399 = vmatmul.mubr.bf16.gmra.mrb[0].mxu0 %v696
        %v1400 = vpop.f32.mrb[0].mxu0
        %v1401 = vadd.f32 %v1328, %v1400
        %v1402 = vpop.f32.mrb[0].mxu0
        %v1403 = vadd.f32 %v1330, %v1402
        %v1404 = vpop.f32.mrb[0].mxu0
        %v1405 = vadd.f32 %v1332, %v1404
        %v1406 = vpop.f32.mrb[0].mxu0
        %v1407 = vadd.f32 %v1334, %v1406
        %1408 = vdwg.mxu0
        %1409 = vmatprep.subr.bf16.mxu0 %v1037
        %1410 = vmatpush1.bf16.msra.mxu0 %v1036
        %1411 = vmatprep.subr.bf16.mxu0 %v1041
        %1412 = vmatpush1.bf16.msra.mxu0 %v1040
        %1413 = vmatprep.subr.bf16.mxu0 %v1045
        %1414 = vmatpush1.bf16.msra.mxu0 %v1044
        %1415 = vmatprep.subr.bf16.mxu0 %v1049
        %1416 = vmatpush1.bf16.msra.mxu0 %v1048
        %1417 = vmatprep.subr.bf16.mxu0 %v1053
        %1418 = vmatpush1.bf16.msra.mxu0 %v1052
        %1419 = vmatprep.subr.bf16.mxu0 %v1057
        %1420 = vmatpush1.bf16.msra.mxu0 %v1056
        %1421 = vmatprep.subr.bf16.mxu0 %v1061
        %1422 = vmatpush1.bf16.msra.mxu0 %v1060
        %1423 = vmatprep.subr.bf16.mxu0 %v1065
        %1424 = vmatpush1.bf16.msra.mxu0 %v1064
        %1425 = vmatprep.subr.bf16.mxu0 %v1069
        %1426 = vmatpush1.bf16.msra.mxu0 %v1068
        %1427 = vmatprep.subr.bf16.mxu0 %v1073
        %1428 = vmatpush1.bf16.msra.mxu0 %v1072
        %1429 = vmatprep.subr.bf16.mxu0 %v1077
        %1430 = vmatpush1.bf16.msra.mxu0 %v1076
        %1431 = vmatprep.subr.bf16.mxu0 %v1081
        %1432 = vmatpush1.bf16.msra.mxu0 %v1080
        %1433 = vmatprep.subr.bf16.mxu0 %v1085
        %1434 = vmatpush1.bf16.msra.mxu0 %v1084
        %1435 = vmatprep.subr.bf16.mxu0 %v1089
        %1436 = vmatpush1.bf16.msra.mxu0 %v1088
        %1437 = vmatprep.subr.bf16.mxu0 %v1093
        %1438 = vmatpush1.bf16.msra.mxu0 %v1092
        %1439 = vmatprep.subr.bf16.mxu0 %v1097
        %1440 = vmatpush1.bf16.msra.mxu0 %v1096
        %1441 = vmatprep.mubr.bf16.mxu0 %v683
        %1442 = vmatmul.mubr.bf16.gmra.mrb[0].mxu0 %v682
        %v1443 = vpop.f32.mrb[0].mxu0
        %v1444 = vadd.f32 0.0, %v1443
        %v1445 = vpop.f32.mrb[0].mxu0
        %v1446 = vadd.f32 0.0, %v1445
        %v1447 = vpop.f32.mrb[0].mxu0
        %v1448 = vadd.f32 0.0, %v1447
        %v1449 = vpop.f32.mrb[0].mxu0
        %v1450 = vadd.f32 0.0, %v1449
        %1451 = vmatprep.mubr.bf16.mxu0 %v687
        %1452 = vmatmul.mubr.bf16.gmra.mrb[0].mxu0 %v686
        %v1453 = vpop.f32.mrb[0].mxu0
        %v1454 = vadd.f32 0.0, %v1453
        %v1455 = vpop.f32.mrb[0].mxu0
        %v1456 = vadd.f32 0.0, %v1455
        %v1457 = vpop.f32.mrb[0].mxu0
        %v1458 = vadd.f32 0.0, %v1457
        %v1459 = vpop.f32.mrb[0].mxu0
        %v1460 = vadd.f32 0.0, %v1459
        %1461 = vmatprep.mubr.bf16.mxu0 %v691
        %1462 = vmatmul.mubr.bf16.gmra.mrb[0].mxu0 %v690
        %v1463 = vpop.f32.mrb[0].mxu0
        %v1464 = vadd.f32 0.0, %v1463
        %v1465 = vpop.f32.mrb[0].mxu0
        %v1466 = vadd.f32 0.0, %v1465
        %v1467 = vpop.f32.mrb[0].mxu0
        %v1468 = vadd.f32 0.0, %v1467
        %v1469 = vpop.f32.mrb[0].mxu0
        %v1470 = vadd.f32 0.0, %v1469
        %1471 = vmatprep.mubr.bf16.mxu0 %v695
        %1472 = vmatmul.mubr.bf16.gmra.mrb[0].mxu0 %v694
        %v1473 = vpop.f32.mrb[0].mxu0
        %v1474 = vadd.f32 0.0, %v1473
        %v1475 = vpop.f32.mrb[0].mxu0
        %v1476 = vadd.f32 0.0, %v1475
        %v1477 = vpop.f32.mrb[0].mxu0
        %v1478 = vadd.f32 0.0, %v1477
        %v1479 = vpop.f32.mrb[0].mxu0
        %v1480 = vadd.f32 0.0, %v1479
        %1481 = vdwg.mxu0
        %1482 = vmatprep.subr.bf16.mxu0 %v1101
        %1483 = vmatpush1.bf16.msra.mxu0 %v1100
        %1484 = vmatprep.subr.bf16.mxu0 %v1105
        %1485 = vmatpush1.bf16.msra.mxu0 %v1104
        %1486 = vmatprep.subr.bf16.mxu0 %v1109
        %1487 = vmatpush1.bf16.msra.mxu0 %v1108
        %1488 = vmatprep.subr.bf16.mxu0 %v1113
        %1489 = vmatpush1.bf16.msra.mxu0 %v1112
        %1490 = vmatprep.subr.bf16.mxu0 %v1117
        %1491 = vmatpush1.bf16.msra.mxu0 %v1116
        %1492 = vmatprep.subr.bf16.mxu0 %v1121
        %1493 = vmatpush1.bf16.msra.mxu0 %v1120
        %1494 = vmatprep.subr.bf16.mxu0 %v1125
        %1495 = vmatpush1.bf16.msra.mxu0 %v1124
        %1496 = vmatprep.subr.bf16.mxu0 %v1129
        %1497 = vmatpush1.bf16.msra.mxu0 %v1128
        %1498 = vmatprep.subr.bf16.mxu0 %v1133
        %1499 = vmatpush1.bf16.msra.mxu0 %v1132
        %1500 = vmatprep.subr.bf16.mxu0 %v1137
        %1501 = vmatpush1.bf16.msra.mxu0 %v1136
        %1502 = vmatprep.subr.bf16.mxu0 %v1141
        %1503 = vmatpush1.bf16.msra.mxu0 %v1140
        %1504 = vmatprep.subr.bf16.mxu0 0
        %1505 = vmatpush1.bf16.msra.mxu0 0
        %1506 = vmatprep.subr.bf16.mxu0 0
        %1507 = vmatpush1.bf16.msra.mxu0 0
        %1508 = vmatprep.subr.bf16.mxu0 0
        %1509 = vmatpush1.bf16.msra.mxu0 0
        %1510 = vmatprep.subr.bf16.mxu0 0
        %1511 = vmatpush1.bf16.msra.mxu0 0
        %1512 = vmatprep.subr.bf16.mxu0 0
        %1513 = vmatpush1.bf16.msra.mxu0 0
        %1514 = vmatprep.mubr.bf16.mxu0 %v1252
        %1515 = vmatmul.mubr.bf16.gmra.mrb[0].mxu0 %v684
        %v1516 = vpop.f32.mrb[0].mxu0
        %v1517 = vadd.f32 %v1444, %v1516
        %v1518 = vpop.f32.mrb[0].mxu0
        %v1519 = vadd.f32 %v1446, %v1518
        %v1520 = vpop.f32.mrb[0].mxu0
        %v1521 = vadd.f32 %v1448, %v1520
        %v1522 = vpop.f32.mrb[0].mxu0
        %v1523 = vadd.f32 %v1450, %v1522
        %1524 = vmatprep.mubr.bf16.mxu0 %v1255
        %1525 = vmatmul.mubr.bf16.gmra.mrb[0].mxu0 %v688
        %v1526 = vpop.f32.mrb[0].mxu0
        %v1527 = vadd.f32 %v1454, %v1526
        %v1528 = vpop.f32.mrb[0].mxu0
        %v1529 = vadd.f32 %v1456, %v1528
        %v1530 = vpop.f32.mrb[0].mxu0
        %v1531 = vadd.f32 %v1458, %v1530
        %v1532 = vpop.f32.mrb[0].mxu0
        %v1533 = vadd.f32 %v1460, %v1532
        %1534 = vmatprep.mubr.bf16.mxu0 %v1258
        %1535 = vmatmul.mubr.bf16.gmra.mrb[0].mxu0 %v692
        %v1536 = vpop.f32.mrb[0].mxu0
        %v1537 = vadd.f32 %v1464, %v1536
        %v1538 = vpop.f32.mrb[0].mxu0
        %v1539 = vadd.f32 %v1466, %v1538
        %v1540 = vpop.f32.mrb[0].mxu0
        %v1541 = vadd.f32 %v1468, %v1540
        %v1542 = vpop.f32.mrb[0].mxu0
        %v1543 = vadd.f32 %v1470, %v1542
        %1544 = vmatprep.mubr.bf16.mxu0 %v1261
        %1545 = vmatmul.mubr.bf16.gmra.mrb[0].mxu0 %v696
        %v1546 = vpop.f32.mrb[0].mxu0
        %v1547 = vadd.f32 %v1474, %v1546
        %v1548 = vpop.f32.mrb[0].mxu0
        %v1549 = vadd.f32 %v1476, %v1548
        %v1550 = vpop.f32.mrb[0].mxu0
        %v1551 = vadd.f32 %v1478, %v1550
        %v1552 = vpop.f32.mrb[0].mxu0
        %v1553 = vadd.f32 %v1480, %v1552
        %1554 = vdwg.mxu0
        %v1555 = vadd.f32 %v478, %v1371
        %v1556 = vadd.f32 %v479, %v1373
        %v1557 = vadd.f32 %v480, %v1517
        %v1558 = vadd.f32 %v481, %v1519
        %v1559 = vadd.f32 %v482, %v1375
        %v1560 = vadd.f32 %v483, %v1377
        %v1561 = vadd.f32 %v484, %v1521
        %v1562 = vadd.f32 %v485, %v1523
        %v1563 = vadd.f32 %v486, %v1381
        %v1564 = vadd.f32 %v487, %v1383
        %v1565 = vadd.f32 %v488, %v1527
        %v1566 = vadd.f32 %v489, %v1529
        %v1567 = vadd.f32 %v490, %v1385
        %v1568 = vadd.f32 %v491, %v1387
        %v1569 = vadd.f32 %v492, %v1531
        %v1570 = vadd.f32 %v493, %v1533
        %v1571 = vadd.f32 %v494, %v1391
        %v1572 = vadd.f32 %v495, %v1393
        %v1573 = vadd.f32 %v496, %v1537
        %v1574 = vadd.f32 %v497, %v1539
        %v1575 = vadd.f32 %v498, %v1395
        %v1576 = vadd.f32 %v499, %v1397
        %v1577 = vadd.f32 %v500, %v1541
        %v1578 = vadd.f32 %v501, %v1543
        %v1579 = vadd.f32 %v502, %v1401
        %v1580 = vadd.f32 %v503, %v1403
        %v1581 = vadd.f32 %v504, %v1547
        %v1582 = vadd.f32 %v505, %v1549
        %v1583 = vadd.f32 %v506, %v1405
        %v1584 = vadd.f32 %v507, %v1407
        %v1585 = vadd.f32 %v508, %v1551
        %v1586 = vadd.f32 %v509, %v1553
        %1587 = vst [vmem:[#allocation2] sm:$0xff] %v1555
        %1588 = vst [vmem:[#allocation2 + $0x8] sm:$0xff] %v1556
        %1589 = vst [vmem:[#allocation2 + $0x10] sm:$0xff] %v1557
        %1590 = vst [vmem:[#allocation2 + $0x18] sm:$0xff] %v1558
        %1591 = vst [vmem:[#allocation2 + $0x20] sm:$0xff] %v1559
        %1592 = vst [vmem:[#allocation2 + $0x28] sm:$0xff] %v1560
        %1593 = vst [vmem:[#allocation2 + $0x30] sm:$0xff] %v1561
        %1594 = vst [vmem:[#allocation2 + $0x38] sm:$0xff] %v1562
        %1595 = vst [vmem:[#allocation2 + $0x40] sm:$0xff] %v1563
        %1596 = vst [vmem:[#allocation2 + $0x48] sm:$0xff] %v1564
        %1597 = vst [vmem:[#allocation2 + $0x50] sm:$0xff] %v1565
        %1598 = vst [vmem:[#allocation2 + $0x58] sm:$0xff] %v1566
        %1599 = vst [vmem:[#allocation2 + $0x60] sm:$0xff] %v1567
        %1600 = vst [vmem:[#allocation2 + $0x68] sm:$0xff] %v1568
        %1601 = vst [vmem:[#allocation2 + $0x70] sm:$0xff] %v1569
        %1602 = vst [vmem:[#allocation2 + $0x78] sm:$0xff] %v1570
        %1603 = vst [vmem:[#allocation2 + $0x80] sm:$0xff] %v1571
        %1604 = vst [vmem:[#allocation2 + $0x88] sm:$0xff] %v1572
        %1605 = vst [vmem:[#allocation2 + $0x90] sm:$0xff] %v1573
        %1606 = vst [vmem:[#allocation2 + $0x98] sm:$0xff] %v1574
        %1607 = vst [vmem:[#allocation2 + $0xa0] sm:$0xff] %v1575
        %1608 = vst [vmem:[#allocation2 + $0xa8] sm:$0xff] %v1576
        %1609 = vst [vmem:[#allocation2 + $0xb0] sm:$0xff] %v1577
        %1610 = vst [vmem:[#allocation2 + $0xb8] sm:$0xff] %v1578
        %1611 = vst [vmem:[#allocation2 + $0xc0] sm:$0xff] %v1579
        %1612 = vst [vmem:[#allocation2 + $0xc8] sm:$0xff] %v1580
        %1613 = vst [vmem:[#allocation2 + $0xd0] sm:$0xff] %v1581
        %1614 = vst [vmem:[#allocation2 + $0xd8] sm:$0xff] %v1582
        %1615 = vst [vmem:[#allocation2 + $0xe0] sm:$0xff] %v1583
        %1616 = vst [vmem:[#allocation2 + $0xe8] sm:$0xff] %v1584
        %1617 = vst [vmem:[#allocation2 + $0xf0] sm:$0xff] %v1585
        %1618 = vst [vmem:[#allocation2 + $0xf8] sm:$0xff] %v1586
        // Predicated region
        $region60: #{conv_t_conv_forward.3} parent=50 // pred_check
          %p1619 = pneg %p442
        $region61: #{conv_t_conv_forward.3} parent=50 // pred_check_branch
          %1621 = sbr.rel (%p1619) target = $region63
        $region62: #{conv_t_conv_forward.3} parent=50 // pred_region
          %v1622 = vld [vmem:[#allocation2] sm:$0xff]
          %v1623 = vld [vmem:[#allocation2 + $0x8] sm:$0xff]
          %v1624 = vld [vmem:[#allocation2 + $0x10] sm:$0xff]
          %v1625 = vld [vmem:[#allocation2 + $0x18] sm:$0xff]
          %v1626 = vld [vmem:[#allocation2 + $0x20] sm:$0xff]
          %v1627 = vld [vmem:[#allocation2 + $0x28] sm:$0xff]
          %v1628 = vld [vmem:[#allocation2 + $0x30] sm:$0xff]
          %v1629 = vld [vmem:[#allocation2 + $0x38] sm:$0xff]
          %v1630 = vld [vmem:[#allocation2 + $0x40] sm:$0xff]
          %v1631 = vld [vmem:[#allocation2 + $0x48] sm:$0xff]
          %v1632 = vld [vmem:[#allocation2 + $0x50] sm:$0xff]
          %v1633 = vld [vmem:[#allocation2 + $0x58] sm:$0xff]
          %v1634 = vld [vmem:[#allocation2 + $0x60] sm:$0xff]
          %v1635 = vld [vmem:[#allocation2 + $0x68] sm:$0xff]
          %v1636 = vld [vmem:[#allocation2 + $0x70] sm:$0xff]
          %v1637 = vld [vmem:[#allocation2 + $0x78] sm:$0xff]
          %v1638 = vld [vmem:[#allocation2 + $0x80] sm:$0xff]
          %v1639 = vld [vmem:[#allocation2 + $0x88] sm:$0xff]
          %v1640 = vld [vmem:[#allocation2 + $0x90] sm:$0xff]
          %v1641 = vld [vmem:[#allocation2 + $0x98] sm:$0xff]
          %v1642 = vld [vmem:[#allocation2 + $0xa0] sm:$0xff]
          %v1643 = vld [vmem:[#allocation2 + $0xa8] sm:$0xff]
          %v1644 = vld [vmem:[#allocation2 + $0xb0] sm:$0xff]
          %v1645 = vld [vmem:[#allocation2 + $0xb8] sm:$0xff]
          %v1646 = vld [vmem:[#allocation2 + $0xc0] sm:$0xff]
          %v1647 = vld [vmem:[#allocation2 + $0xc8] sm:$0xff]
          %v1648 = vld [vmem:[#allocation2 + $0xd0] sm:$0xff]
          %v1649 = vld [vmem:[#allocation2 + $0xd8] sm:$0xff]
          %v1650 = vld [vmem:[#allocation2 + $0xe0] sm:$0xff]
          %v1651 = vld [vmem:[#allocation2 + $0xe8] sm:$0xff]
          %v1652 = vld [vmem:[#allocation2 + $0xf0] sm:$0xff]
          %v1653 = vld [vmem:[#allocation2 + $0xf8] sm:$0xff]
          %v1654 = vld [vmem:[%s2] sm:$0xff]
          %v1655 = vld [vmem:[%s2 + $0x8] sm:$0xff]
          %v1656 = vld [vmem:[%s2 + $0x10] sm:$0xff]
          %v1657 = vld [vmem:[%s2 + $0x18] sm:$0xff]
          %v1658 = vld [vmem:[%s2 + $0x20] sm:$0xff]
          %v1659 = vld [vmem:[%s2 + $0x28] sm:$0xff]
          %v1660 = vld [vmem:[%s2 + $0x30] sm:$0xff]
          %v1661 = vld [vmem:[%s2 + $0x38] sm:$0xff]
          %1663 = vset.pattern.permute.xlu0 0
          %1664 = vperm.xlu0 %1663, %v1654
          %v1665 = vpop.permute.xlu0 %1664
          %1668 = vset.pattern.permute.xlu0 0
          %1669 = vperm.xlu0 %1668, %v1655
          %v1670 = vpop.permute.xlu0 %1669
          %1673 = vset.pattern.permute.xlu0 0
          %1674 = vperm.xlu0 %1673, %v1656
          %v1675 = vpop.permute.xlu0 %1674
          %1678 = vset.pattern.permute.xlu0 0
          %1679 = vperm.xlu0 %1678, %v1657
          %v1680 = vpop.permute.xlu0 %1679
          %1683 = vset.pattern.permute.xlu0 0
          %1684 = vperm.xlu0 %1683, %v1658
          %v1685 = vpop.permute.xlu0 %1684
          %1688 = vset.pattern.permute.xlu0 0
          %1689 = vperm.xlu0 %1688, %v1659
          %v1690 = vpop.permute.xlu0 %1689
          %1693 = vset.pattern.permute.xlu0 0
          %1694 = vperm.xlu0 %1693, %v1660
          %v1695 = vpop.permute.xlu0 %1694
          %1698 = vset.pattern.permute.xlu0 0
          %1699 = vperm.xlu0 %1698, %v1661
          %v1700 = vpop.permute.xlu0 %1699
          %v1702 = vadd.f32 %v1622, %v1665
          %v1703 = vadd.f32 %v1623, %v1665
          %v1704 = vadd.f32 %v1624, %v1665
          %v1705 = vadd.f32 %v1625, %v1665
          %v1706 = vadd.f32 %v1626, %v1670
          %v1707 = vadd.f32 %v1627, %v1670
          %v1708 = vadd.f32 %v1628, %v1670
          %v1709 = vadd.f32 %v1629, %v1670
          %v1710 = vadd.f32 %v1630, %v1675
          %v1711 = vadd.f32 %v1631, %v1675
          %v1712 = vadd.f32 %v1632, %v1675
          %v1713 = vadd.f32 %v1633, %v1675
          %v1714 = vadd.f32 %v1634, %v1680
          %v1715 = vadd.f32 %v1635, %v1680
          %v1716 = vadd.f32 %v1636, %v1680
          %v1717 = vadd.f32 %v1637, %v1680
          %v1718 = vadd.f32 %v1638, %v1685
          %v1719 = vadd.f32 %v1639, %v1685
          %v1720 = vadd.f32 %v1640, %v1685
          %v1721 = vadd.f32 %v1641, %v1685
          %v1722 = vadd.f32 %v1642, %v1690
          %v1723 = vadd.f32 %v1643, %v1690
          %v1724 = vadd.f32 %v1644, %v1690
          %v1725 = vadd.f32 %v1645, %v1690
          %v1726 = vadd.f32 %v1646, %v1695
          %v1727 = vadd.f32 %v1647, %v1695
          %v1728 = vadd.f32 %v1648, %v1695
          %v1729 = vadd.f32 %v1649, %v1695
          %v1730 = vadd.f32 %v1650, %v1700
          %v1731 = vadd.f32 %v1651, %v1700
          %v1732 = vadd.f32 %v1652, %v1700
          %v1733 = vadd.f32 %v1653, %v1700
          %v1734 = vmax.f32 %v1702, 0.0
          %v1735 = vmax.f32 %v1703, 0.0
          %v1736 = vmax.f32 %v1704, 0.0
          %v1737 = vmax.f32 %v1705, 0.0
          %v1738 = vmax.f32 %v1706, 0.0
          %v1739 = vmax.f32 %v1707, 0.0
          %v1740 = vmax.f32 %v1708, 0.0
          %v1741 = vmax.f32 %v1709, 0.0
          %v1742 = vmax.f32 %v1710, 0.0
          %v1743 = vmax.f32 %v1711, 0.0
          %v1744 = vmax.f32 %v1712, 0.0
          %v1745 = vmax.f32 %v1713, 0.0
          %v1746 = vmax.f32 %v1714, 0.0
          %v1747 = vmax.f32 %v1715, 0.0
          %v1748 = vmax.f32 %v1716, 0.0
          %v1749 = vmax.f32 %v1717, 0.0
          %v1750 = vmax.f32 %v1718, 0.0
          %v1751 = vmax.f32 %v1719, 0.0
          %v1752 = vmax.f32 %v1720, 0.0
          %v1753 = vmax.f32 %v1721, 0.0
          %v1754 = vmax.f32 %v1722, 0.0
          %v1755 = vmax.f32 %v1723, 0.0
          %v1756 = vmax.f32 %v1724, 0.0
          %v1757 = vmax.f32 %v1725, 0.0
          %v1758 = vmax.f32 %v1726, 0.0
          %v1759 = vmax.f32 %v1727, 0.0
          %v1760 = vmax.f32 %v1728, 0.0
          %v1761 = vmax.f32 %v1729, 0.0
          %v1762 = vmax.f32 %v1730, 0.0
          %v1763 = vmax.f32 %v1731, 0.0
          %v1764 = vmax.f32 %v1732, 0.0
          %v1765 = vmax.f32 %v1733, 0.0
          %1766 = vst [vmem:[%s431] sm:$0xff] %v1734
          %1767 = vst [vmem:[%s431 + $0x8] sm:$0xff] %v1735
          %1768 = vst [vmem:[%s431 + $0x10] sm:$0xff] %v1736
          %1769 = vst [vmem:[%s431 + $0x18] sm:$0xff] %v1737
          %1770 = vst [vmem:[%s431 + $0x20] sm:$0xff] %v1738
          %1771 = vst [vmem:[%s431 + $0x28] sm:$0xff] %v1739
          %1772 = vst [vmem:[%s431 + $0x30] sm:$0xff] %v1740
          %1773 = vst [vmem:[%s431 + $0x38] sm:$0xff] %v1741
          %1774 = vst [vmem:[%s431 + $0x40] sm:$0xff] %v1742
          %1775 = vst [vmem:[%s431 + $0x48] sm:$0xff] %v1743
          %1776 = vst [vmem:[%s431 + $0x50] sm:$0xff] %v1744
          %1777 = vst [vmem:[%s431 + $0x58] sm:$0xff] %v1745
          %1778 = vst [vmem:[%s431 + $0x60] sm:$0xff] %v1746
          %1779 = vst [vmem:[%s431 + $0x68] sm:$0xff] %v1747
          %1780 = vst [vmem:[%s431 + $0x70] sm:$0xff] %v1748
          %1781 = vst [vmem:[%s431 + $0x78] sm:$0xff] %v1749
          %1782 = vst [vmem:[%s431 + $0x80] sm:$0xff] %v1750
          %1783 = vst [vmem:[%s431 + $0x88] sm:$0xff] %v1751
          %1784 = vst [vmem:[%s431 + $0x90] sm:$0xff] %v1752
          %1785 = vst [vmem:[%s431 + $0x98] sm:$0xff] %v1753
          %1786 = vst [vmem:[%s431 + $0xa0] sm:$0xff] %v1754
          %1787 = vst [vmem:[%s431 + $0xa8] sm:$0xff] %v1755
          %1788 = vst [vmem:[%s431 + $0xb0] sm:$0xff] %v1756
          %1789 = vst [vmem:[%s431 + $0xb8] sm:$0xff] %v1757
          %1790 = vst [vmem:[%s431 + $0xc0] sm:$0xff] %v1758
          %1791 = vst [vmem:[%s431 + $0xc8] sm:$0xff] %v1759
          %1792 = vst [vmem:[%s431 + $0xd0] sm:$0xff] %v1760
          %1793 = vst [vmem:[%s431 + $0xd8] sm:$0xff] %v1761
          %1794 = vst [vmem:[%s431 + $0xe0] sm:$0xff] %v1762
          %1795 = vst [vmem:[%s431 + $0xe8] sm:$0xff] %v1763
          %1796 = vst [vmem:[%s431 + $0xf0] sm:$0xff] %v1764
          %1797 = vst [vmem:[%s431 + $0xf8] sm:$0xff] %v1765
        $region63: #{conv_t_conv_forward.3} parent=50 // pred_fallthru
          _
        %s1798 = sand.u32 %s109, 1
        %s1799 = sand.u32 %s109, 1
        %s1800 = smul.addr %s1799, 256
        %s1801 = scalar_lea.vmem [#allocation4], %s1800
        // Predicated region
        $region64: #{conv_t_conv_forward.3} parent=50 // pred_check
          %p1802 = pneg %p119
        $region65: #{conv_t_conv_forward.3} parent=50 // pred_check_branch
          %1804 = sbr.rel (%p1802) target = $region67
        $region66: #{conv_t_conv_forward.3} parent=50 // pred_region
          %s1805 = smul.u32 4, %s18
          %s1806 = smul.addr %s1805, 8
          %s1807 = scalar_lea.vmem %s3, %s1806
          // Predicated region
          $region68: #{conv_t_conv_forward.3} parent=66 // pred_check
            _
          $region69: #{conv_t_conv_forward.3} parent=66 // pred_check_branch
            %1809 = sbr.rel (0) target = $region71
          $region70: #{conv_t_conv_forward.3} parent=66 // pred_region
            // Predicated region
            $region72: #{conv_t_conv_forward.3} parent=70 // pred_check
              _
            $region73: #{conv_t_conv_forward.3} parent=70 // pred_check_branch
              %1811 = sbr.rel (0) target = $region75
            $region74: #{conv_t_conv_forward.3} parent=70 // pred_region
              loop: start=0, step=1, limit=1
              $region76: #{conv_t_conv_forward.3} parent=74 // loop_pre_header
                _
              $region77: #{conv_t_conv_forward.3} parent=74 // loop_header
                %s1813 = sphi 0, %s1817
                %p1814 = scmp.ge.s32.totalorder %s1813, 1
                %s1818 = sphi %s1801, %s1801
                %s1819 = sphi %s1807, %s1807
              $region78: #{conv_t_conv_forward.3} parent=74 // loop_header_branch
                %1816 = sbr.rel (%p1814) target = $region82
              $region79: #{conv_t_conv_forward.3} parent=74 // loop_body
                %v1820 = vld [vmem:[%s1818] sm:$0xff]
                %1821 = vst [vmem:[%s1819] sm:$0xff] %v1820
                %v1822 = vld [vmem:[%s1818 + $0x8] sm:$0xff]
                %1823 = vst [vmem:[%s1819 + $0x8] sm:$0xff] %v1822
                %v1824 = vld [vmem:[%s1818 + $0x10] sm:$0xff]
                %1825 = vst [vmem:[%s1819 + $0x10] sm:$0xff] %v1824
                %v1826 = vld [vmem:[%s1818 + $0x18] sm:$0xff]
                %1827 = vst [vmem:[%s1819 + $0x18] sm:$0xff] %v1826
                %v1828 = vld [vmem:[%s1818 + $0x20] sm:$0xff]
                %1829 = vst [vmem:[%s1819 + $0x40] sm:$0xff] %v1828
                %v1830 = vld [vmem:[%s1818 + $0x28] sm:$0xff]
                %1831 = vst [vmem:[%s1819 + $0x48] sm:$0xff] %v1830
                %v1832 = vld [vmem:[%s1818 + $0x30] sm:$0xff]
                %1833 = vst [vmem:[%s1819 + $0x50] sm:$0xff] %v1832
                %v1834 = vld [vmem:[%s1818 + $0x38] sm:$0xff]
                %1835 = vst [vmem:[%s1819 + $0x58] sm:$0xff] %v1834
                %v1836 = vld [vmem:[%s1818 + $0x40] sm:$0xff]
                %1837 = vst [vmem:[%s1819 + $0x80] sm:$0xff] %v1836
                %v1838 = vld [vmem:[%s1818 + $0x48] sm:$0xff]
                %1839 = vst [vmem:[%s1819 + $0x88] sm:$0xff] %v1838
                %v1840 = vld [vmem:[%s1818 + $0x50] sm:$0xff]
                %1841 = vst [vmem:[%s1819 + $0x90] sm:$0xff] %v1840
                %v1842 = vld [vmem:[%s1818 + $0x58] sm:$0xff]
                %1843 = vst [vmem:[%s1819 + $0x98] sm:$0xff] %v1842
                %v1844 = vld [vmem:[%s1818 + $0x60] sm:$0xff]
                %1845 = vst [vmem:[%s1819 + $0xc0] sm:$0xff] %v1844
                %v1846 = vld [vmem:[%s1818 + $0x68] sm:$0xff]
                %1847 = vst [vmem:[%s1819 + $0xc8] sm:$0xff] %v1846
                %v1848 = vld [vmem:[%s1818 + $0x70] sm:$0xff]
                %1849 = vst [vmem:[%s1819 + $0xd0] sm:$0xff] %v1848
                %v1850 = vld [vmem:[%s1818 + $0x78] sm:$0xff]
                %1851 = vst [vmem:[%s1819 + $0xd8] sm:$0xff] %v1850
                %v1852 = vld [vmem:[%s1818 + $0x80] sm:$0xff]
                %1853 = vst [vmem:[%s1819 + $0x100] sm:$0xff] %v1852
                %v1854 = vld [vmem:[%s1818 + $0x88] sm:$0xff]
                %1855 = vst [vmem:[%s1819 + $0x108] sm:$0xff] %v1854
                %v1856 = vld [vmem:[%s1818 + $0x90] sm:$0xff]
                %1857 = vst [vmem:[%s1819 + $0x110] sm:$0xff] %v1856
                %v1858 = vld [vmem:[%s1818 + $0x98] sm:$0xff]
                %1859 = vst [vmem:[%s1819 + $0x118] sm:$0xff] %v1858
                %v1860 = vld [vmem:[%s1818 + $0xa0] sm:$0xff]
                %1861 = vst [vmem:[%s1819 + $0x140] sm:$0xff] %v1860
                %v1862 = vld [vmem:[%s1818 + $0xa8] sm:$0xff]
                %1863 = vst [vmem:[%s1819 + $0x148] sm:$0xff] %v1862
                %v1864 = vld [vmem:[%s1818 + $0xb0] sm:$0xff]
                %1865 = vst [vmem:[%s1819 + $0x150] sm:$0xff] %v1864
                %v1866 = vld [vmem:[%s1818 + $0xb8] sm:$0xff]
                %1867 = vst [vmem:[%s1819 + $0x158] sm:$0xff] %v1866
                %v1868 = vld [vmem:[%s1818 + $0xc0] sm:$0xff]
                %1869 = vst [vmem:[%s1819 + $0x180] sm:$0xff] %v1868
                %v1870 = vld [vmem:[%s1818 + $0xc8] sm:$0xff]
                %1871 = vst [vmem:[%s1819 + $0x188] sm:$0xff] %v1870
                %v1872 = vld [vmem:[%s1818 + $0xd0] sm:$0xff]
                %1873 = vst [vmem:[%s1819 + $0x190] sm:$0xff] %v1872
                %v1874 = vld [vmem:[%s1818 + $0xd8] sm:$0xff]
                %1875 = vst [vmem:[%s1819 + $0x198] sm:$0xff] %v1874
                %v1876 = vld [vmem:[%s1818 + $0xe0] sm:$0xff]
                %1877 = vst [vmem:[%s1819 + $0x1c0] sm:$0xff] %v1876
                %v1878 = vld [vmem:[%s1818 + $0xe8] sm:$0xff]
                %1879 = vst [vmem:[%s1819 + $0x1c8] sm:$0xff] %v1878
                %v1880 = vld [vmem:[%s1818 + $0xf0] sm:$0xff]
                %1881 = vst [vmem:[%s1819 + $0x1d0] sm:$0xff] %v1880
                %v1882 = vld [vmem:[%s1818 + $0xf8] sm:$0xff]
                %1883 = vst [vmem:[%s1819 + $0x1d8] sm:$0xff] %v1882
              $region80: #{conv_t_conv_forward.3} parent=74 // loop_footer
                %s1817 = sadd.s32 1, %s1813
              $region81: #{conv_t_conv_forward.3} parent=74 // loop_footer_branch
                %1812 = sbr.rel target = $region77
              $region82: #{conv_t_conv_forward.3} parent=74 // loop_exit
                _
            $region75: #{conv_t_conv_forward.3} parent=70 // pred_fallthru
              _
            // Predicated region
            $region83: #{conv_t_conv_forward.3} parent=70 // pred_check
              _
            $region84: #{conv_t_conv_forward.3} parent=70 // pred_check_branch
              %1885 = sbr.rel target = $region86
            $region85: #{conv_t_conv_forward.3} parent=70 // pred_region
              _
            $region86: #{conv_t_conv_forward.3} parent=70 // pred_fallthru
              _
          $region71: #{conv_t_conv_forward.3} parent=66 // pred_fallthru
            _
          %1886 = vnop
        $region67: #{conv_t_conv_forward.3} parent=50 // pred_fallthru
          _
      $region51: #{conv_t_conv_forward.3} parent=5 // pred_fallthru
        _
      %p1887 = scmp.le.s32.totalorder 2, %s9
      // Predicated region
      $region87: #{conv_t_conv_forward.3} parent=5 // pred_check
        %p1888 = pneg %p1887
      $region88: #{conv_t_conv_forward.3} parent=5 // pred_check_branch
        %1890 = sbr.rel (%p1888) target = $region90
      $region89: #{conv_t_conv_forward.3} parent=5 // pred_region
        %s1891 = ssub.s32 %s9, 2
        // Predicated region
        $region91: #{conv_t_conv_forward.3} parent=89 // pred_check
          %p1892 = pneg %p125
        $region92: #{conv_t_conv_forward.3} parent=89 // pred_check_branch
          %1894 = sbr.rel (%p1892) target = $region94
        $region93: #{conv_t_conv_forward.3} parent=89 // pred_region
          %s1895 = sand.u32 %s110, 1
          %s1896 = sand.u32 %s110, 1
          %s1897 = smul.addr %s1896, 256
          %s1898 = scalar_lea.vmem [#allocation4], %s1897
        $region94: #{conv_t_conv_forward.3} parent=89 // pred_fallthru
          _
      $region90: #{conv_t_conv_forward.3} parent=5 // pred_fallthru
        _
    $region6: #{conv_t_conv_forward.3} parent=1 // loop_footer
      %s13 = sadd.s32 1, %s9
    $region7: #{conv_t_conv_forward.3} parent=1 // loop_footer_branch
      %8 = sbr.rel target = $region3
    $region8: #{conv_t_conv_forward.3} parent=1 // loop_exit
      _

</llo_original>
